<compile_context>
chip_gen: v6e
topology: v6e:2x2x1
jax: 0.10.0
libtpu: 0.0.40
codegen_flags: <defaults>
</compile_context>

<pallas_src>
import functools

import jax
import jax.numpy as jnp
from jax.experimental import pallas as pl
from jax.experimental.pallas import tpu as pltpu

EPS = 1e-16        # KL_div eps
NORM_EPS = 1e-12   # tiny guard for the l2 norm (reference divides by raw norm)


# ----------------------------------------------------------- block sizing ---
def _pick_block_batch(B, C, HW, vmem_budget_bytes=8 << 20):
    """Largest per-step batch TB such that (a) TB divides B, (b) the grid keeps
    >= 2 steps (so v7x's two TensorCores both get work), and (c) a conservative
    VMEM budget holds:  ~8x per-sample bytes for the double-buffered
    x/d0/x_adv/r_adv streams plus ~16x headroom for the in-kernel f32 working
    slabs (pred/log_pred/q/gz/... lists).  8 MiB keeps us under v5e's 16 MiB
    default scoped VMEM; v6e (128 MiB) and v7x (64 MiB/TC) have more room."""
    per_sample = C * HW * 4
    cap = max(1, vmem_budget_bytes // (24 * per_sample))
    cap = min(cap, max(1, B // 2))          # >= 2 grid steps when B >= 2
    tb = 1
    for t in range(1, cap + 1):
        if B % t == 0:
            tb = t
    return tb


# ---------------------------------------------------------- fused VAT kernel -
def _vat_kernel(xi, eps_scaled, inv_p, ip,
                x_ref, d0_ref, w_ref, b_ref,
                kl_ref, xadv_ref, radv_ref):
    TB, C, HW = x_ref.shape
    K = b_ref.shape[0]

    # --- weights / bias as SMEM scalars (read once, reused by all 3 predicts)
    wk = [[w_ref[k * C + c] for c in range(C)] for k in range(K)]
    bk = [b_ref[k] for k in range(K)]

    # --- per-channel slabs, each (TB, HW): lanes = pixels, sublanes = samples
    x_blk = x_ref[...]
    d0_blk = d0_ref[...]
    x_c = [x_blk[:, c, :] for c in range(C)]

    def logits_of(xc):
        # z_k = sum_c w[k,c] * x_c + b_k   -- unrolled VPU FMAs, no MXU
        zs = []
        for k in range(K):
            z = xc[0] * wk[k][0]
            for c in range(1, C):
                z = z + xc[c] * wk[k][c]
            zs.append(z + bk[k])
        return zs

    def softmax_parts(zs):
        # returns (centered logits, exp(centered), sum of exps)
        m = zs[0]
        for z in zs[1:]:
            m = jnp.maximum(m, z)
        zc = [z - m for z in zs]
        es = [jnp.exp(z) for z in zc]
        s = es[0]
        for e in es[1:]:
            s = s + e
        return zc, es, s

    def l2_normalize(vs):
        # per-sample (per sublane row) norm over the whole C*HW block
        ss = jnp.sum(vs[0] * vs[0], axis=1, keepdims=True)
        for v in vs[1:]:
            ss = ss + jnp.sum(v * v, axis=1, keepdims=True)
        inv = jax.lax.rsqrt(ss + NORM_EPS)
        return [v * inv for v in vs]

    # --- pred = softmax(model.predict(x), 1)  (no-grad target) + log-softmax
    zc0, e0, s0 = softmax_parts(logits_of(x_c))
    inv_s0 = 1.0 / s0                       # exact (final-loss path)
    log_s0 = jnp.log(s0)
    pred = [e * inv_s0 for e in e0]
    log_pred = [z - log_s0 for z in zc0]    # analytic log-softmax

    # --- d = _l2_normalize(torch.randn_like(x))
    # TODO(synk): d0 could be generated in-kernel (pltpu.prng_seed +
    # prng_random_bits) to halve input HBM traffic; kept as a jax.random input
    # so the random stream matches the plain-JAX reference path.
    d_c = l2_normalize([d0_blk[:, c, :] for c in range(C)])

    # --- power iteration for the adversarial direction.
    # TODO(synk): PyTorch uses autograd (adv_distance.backward()); here the
    # backward pass is analytic (exact for the 1x1-conv + softmax + KL model).
    def power_step(d_list):
        xp = [x_c[c] + xi * d_list[c] for c in range(C)]
        _, eq, sq = softmax_parts(logits_of(xp))
        rinv = pl.reciprocal(sq, approx=True)              # renormalised below
        q = [e * rinv for e in eq]
        gq = [-(pred[k] * pl.reciprocal(q[k] + EPS, approx=True)) * inv_p
              for k in range(K)]                            # dL/dq
        dot = gq[0] * q[0]
        for k in range(1, K):
            dot = dot + gq[k] * q[k]
        gz = [q[k] * (gq[k] - dot) for k in range(K)]       # softmax backward
        g_c = []
        for c in range(C):                                  # dL/dd_c = xi * W^T gz
            g = gz[0] * wk[0][c]
            for k in range(1, K):
                g = g + gz[k] * wk[k][c]
            g_c.append(xi * g)
        return l2_normalize(g_c)

    if ip == 1:
        d_c = power_step(d_c)
    else:
        # bounded live ranges for ip > 1 (avoid full static unroll + spills)
        d_c = list(jax.lax.fori_loop(
            0, ip, lambda _, t: tuple(power_step(list(t))), tuple(d_c),
            unroll=ip <= 4))

    # --- r_adv, x_adv and the fused KL against the clean prediction
    r_c = [d * eps_scaled for d in d_c]
    xa_c = [x_c[c] + r_c[c] for c in range(C)]

    zc2, _, s2 = softmax_parts(logits_of(xa_c))
    log_s2 = jnp.log(s2)                    # log-softmax; no probs needed
    kl = pred[0] * (log_pred[0] - (zc2[0] - log_s2))
    for k in range(1, K):
        kl = kl + pred[k] * (log_pred[k] - (zc2[k] - log_s2))

    # lane-dense per-block partial sum (unmasked store)
    kl_ref[...] = jnp.full(kl_ref.shape, jnp.sum(kl), dtype=jnp.float32)

    for c in range(C):
        xadv_ref[:, c, :] = xa_c[c]
        radv_ref[:, c, :] = r_c[c]


# -------------------------------------------------------------- VAT forward --
def vat_loss(x_nchw, w, b, key, xi=10.0, eps=1.0, prop_eps=0.25, ip=1):
    # TODO(synk): only float `eps` supported (per-sample tensor eps not implemented).
    # (_disable_tracking_bn_stats is a no-op: synthetic model has no BatchNorm.)
    B, C, H, Wd = x_nchw.shape
    HW = H * Wd
    P = B * HW
    K = w.shape[0]

    xf = x_nchw.reshape(B, C, HW).astype(jnp.float32)   # pure reshape, no transpose
    d0 = jax.random.normal(key, (B, C, HW), dtype=jnp.float32)
    w_flat = w.astype(jnp.float32).reshape(-1)          # (K*C,) SMEM scalars
    b_flat = b.astype(jnp.float32).reshape(-1)          # (K,)   SMEM scalars

    TB = _pick_block_batch(B, C, HW)
    G = B // TB

    kernel = functools.partial(_vat_kernel, float(xi), float(eps * prop_eps),
                               float(1.0 / P), int(ip))

    kl_part, x_adv_f, r_adv_f = pl.pallas_call(
        kernel,
        out_shape=(jax.ShapeDtypeStruct((G, 1, 128), jnp.float32),
                   jax.ShapeDtypeStruct((B, C, HW), jnp.float32),
                   jax.ShapeDtypeStruct((B, C, HW), jnp.float32)),
        grid=(G,),
        in_specs=[pl.BlockSpec((TB, C, HW), lambda i: (i, 0, 0)),          # x
                  pl.BlockSpec((TB, C, HW), lambda i: (i, 0, 0)),          # d0
                  pl.BlockSpec(memory_space=pltpu.MemorySpace.SMEM),       # W (flat)
                  pl.BlockSpec(memory_space=pltpu.MemorySpace.SMEM)],      # bias
        out_specs=[pl.BlockSpec((1, 1, 128), lambda i: (i, 0, 0)),         # KL partials
                   pl.BlockSpec((TB, C, HW), lambda i: (i, 0, 0)),         # x_adv
                   pl.BlockSpec((TB, C, HW), lambda i: (i, 0, 0))],        # r_adv
        compiler_params=pltpu.CompilerParams(
            dimension_semantics=("parallel",)),
    )(xf, d0, w_flat, b_flat)

    # KL_div(reduce=True): .sum(dim=1).mean() over the B*H*W "pixels"
    lds = jnp.sum(kl_part[:, 0, 0]) / jnp.float32(P)
    x_adv = x_adv_f.reshape(B, C, H, Wd)                 # back to NCHW (reshape only)
    r_adv = r_adv_f.reshape(B, C, H, Wd)
    return lds, x_adv, r_adv


if __name__ == "__main__":
    key = jax.random.PRNGKey(0)
    kx, kw, kb, kd = jax.random.split(key, 4)

    B, C, H, W = 2, 4, 16, 16      # x: NCHW, matches PyTorch conv convention
    K = 8                          # number of classes of the synthetic model

    x = jax.random.normal(kx, (B, C, H, W), dtype=jnp.float32)
    w = 0.1 * jax.random.normal(kw, (K, C), dtype=jnp.float32)   # 1x1-conv weight
    b = 0.01 * jax.random.normal(kb, (K,), dtype=jnp.float32)    # bias

    fn = jax.jit(functools.partial(vat_loss, xi=10.0, eps=1.0,
                                   prop_eps=0.25, ip=1))
    lds, x_adv, r_adv = fn(x, w, b, kd)
    jax.block_until_ready((lds, x_adv, r_adv))

    assert x_adv.shape == x.shape and r_adv.shape == x.shape
    assert bool(jnp.isfinite(lds))
    print("KERNEL_OK")
</pallas_src>

<mosaic_0001>
module attributes {stable_mosaic.version = 11 : i64} {
  func.func @_vat_kernel(%arg0: i32, %arg1: memref<1x4x256xf32, #tpu.memory_space<vmem>>, %arg2: memref<1x4x256xf32, #tpu.memory_space<vmem>>, %arg3: memref<32xf32, #tpu.memory_space<smem>>, %arg4: memref<8xf32, #tpu.memory_space<smem>>, %arg5: memref<1x1x128xf32, #tpu.memory_space<vmem>>, %arg6: memref<1x4x256xf32, #tpu.memory_space<vmem>>, %arg7: memref<1x4x256xf32, #tpu.memory_space<vmem>>) attributes {dimension_semantics = [#tpu.dimension_semantics<parallel>], iteration_bounds = array<i64: 2>, scalar_prefetch = 0 : i64, scratch_operands = 0 : i64, tpu.core_type = #tpu.core_type<tc>, window_params = [{transform_indices = @transform_0, window_bounds = array<i64: 1, 4, 256>}, {transform_indices = @transform_1, window_bounds = array<i64: 1, 4, 256>}, {transform_indices = @transform_2, window_bounds = array<i64: 32>}, {transform_indices = @transform_3, window_bounds = array<i64: 8>}, {transform_indices = @transform_4, window_bounds = array<i64: 1, 1, 128>}, {transform_indices = @transform_5, window_bounds = array<i64: 1, 4, 256>}, {transform_indices = @transform_6, window_bounds = array<i64: 1, 4, 256>}]} {
    %c0 = arith.constant 0 : index
    %0 = memref.load %arg3[%c0] : memref<32xf32, #tpu.memory_space<smem>>
    %c1 = arith.constant 1 : index
    %1 = memref.load %arg3[%c1] : memref<32xf32, #tpu.memory_space<smem>>
    %c2 = arith.constant 2 : index
    %2 = memref.load %arg3[%c2] : memref<32xf32, #tpu.memory_space<smem>>
    %c3 = arith.constant 3 : index
    %3 = memref.load %arg3[%c3] : memref<32xf32, #tpu.memory_space<smem>>
    %c4 = arith.constant 4 : index
    %4 = memref.load %arg3[%c4] : memref<32xf32, #tpu.memory_space<smem>>
    %c5 = arith.constant 5 : index
    %5 = memref.load %arg3[%c5] : memref<32xf32, #tpu.memory_space<smem>>
    %c6 = arith.constant 6 : index
    %6 = memref.load %arg3[%c6] : memref<32xf32, #tpu.memory_space<smem>>
    %c7 = arith.constant 7 : index
    %7 = memref.load %arg3[%c7] : memref<32xf32, #tpu.memory_space<smem>>
    %c8 = arith.constant 8 : index
    %8 = memref.load %arg3[%c8] : memref<32xf32, #tpu.memory_space<smem>>
    %c9 = arith.constant 9 : index
    %9 = memref.load %arg3[%c9] : memref<32xf32, #tpu.memory_space<smem>>
    %c10 = arith.constant 10 : index
    %10 = memref.load %arg3[%c10] : memref<32xf32, #tpu.memory_space<smem>>
    %c11 = arith.constant 11 : index
    %11 = memref.load %arg3[%c11] : memref<32xf32, #tpu.memory_space<smem>>
    %c12 = arith.constant 12 : index
    %12 = memref.load %arg3[%c12] : memref<32xf32, #tpu.memory_space<smem>>
    %c13 = arith.constant 13 : index
    %13 = memref.load %arg3[%c13] : memref<32xf32, #tpu.memory_space<smem>>
    %c14 = arith.constant 14 : index
    %14 = memref.load %arg3[%c14] : memref<32xf32, #tpu.memory_space<smem>>
    %c15 = arith.constant 15 : index
    %15 = memref.load %arg3[%c15] : memref<32xf32, #tpu.memory_space<smem>>
    %c16 = arith.constant 16 : index
    %16 = memref.load %arg3[%c16] : memref<32xf32, #tpu.memory_space<smem>>
    %c17 = arith.constant 17 : index
    %17 = memref.load %arg3[%c17] : memref<32xf32, #tpu.memory_space<smem>>
    %c18 = arith.constant 18 : index
    %18 = memref.load %arg3[%c18] : memref<32xf32, #tpu.memory_space<smem>>
    %c19 = arith.constant 19 : index
    %19 = memref.load %arg3[%c19] : memref<32xf32, #tpu.memory_space<smem>>
    %c20 = arith.constant 20 : index
    %20 = memref.load %arg3[%c20] : memref<32xf32, #tpu.memory_space<smem>>
    %c21 = arith.constant 21 : index
    %21 = memref.load %arg3[%c21] : memref<32xf32, #tpu.memory_space<smem>>
    %c22 = arith.constant 22 : index
    %22 = memref.load %arg3[%c22] : memref<32xf32, #tpu.memory_space<smem>>
    %c23 = arith.constant 23 : index
    %23 = memref.load %arg3[%c23] : memref<32xf32, #tpu.memory_space<smem>>
    %c24 = arith.constant 24 : index
    %24 = memref.load %arg3[%c24] : memref<32xf32, #tpu.memory_space<smem>>
    %c25 = arith.constant 25 : index
    %25 = memref.load %arg3[%c25] : memref<32xf32, #tpu.memory_space<smem>>
    %c26 = arith.constant 26 : index
    %26 = memref.load %arg3[%c26] : memref<32xf32, #tpu.memory_space<smem>>
    %c27 = arith.constant 27 : index
    %27 = memref.load %arg3[%c27] : memref<32xf32, #tpu.memory_space<smem>>
    %c28 = arith.constant 28 : index
    %28 = memref.load %arg3[%c28] : memref<32xf32, #tpu.memory_space<smem>>
    %c29 = arith.constant 29 : index
    %29 = memref.load %arg3[%c29] : memref<32xf32, #tpu.memory_space<smem>>
    %c30 = arith.constant 30 : index
    %30 = memref.load %arg3[%c30] : memref<32xf32, #tpu.memory_space<smem>>
    %c31 = arith.constant 31 : index
    %31 = memref.load %arg3[%c31] : memref<32xf32, #tpu.memory_space<smem>>
    %c0_0 = arith.constant 0 : index
    %32 = memref.load %arg4[%c0_0] : memref<8xf32, #tpu.memory_space<smem>>
    %c1_1 = arith.constant 1 : index
    %33 = memref.load %arg4[%c1_1] : memref<8xf32, #tpu.memory_space<smem>>
    %c2_2 = arith.constant 2 : index
    %34 = memref.load %arg4[%c2_2] : memref<8xf32, #tpu.memory_space<smem>>
    %c3_3 = arith.constant 3 : index
    %35 = memref.load %arg4[%c3_3] : memref<8xf32, #tpu.memory_space<smem>>
    %c4_4 = arith.constant 4 : index
    %36 = memref.load %arg4[%c4_4] : memref<8xf32, #tpu.memory_space<smem>>
    %c5_5 = arith.constant 5 : index
    %37 = memref.load %arg4[%c5_5] : memref<8xf32, #tpu.memory_space<smem>>
    %c6_6 = arith.constant 6 : index
    %38 = memref.load %arg4[%c6_6] : memref<8xf32, #tpu.memory_space<smem>>
    %c7_7 = arith.constant 7 : index
    %39 = memref.load %arg4[%c7_7] : memref<8xf32, #tpu.memory_space<smem>>
    %c0_8 = arith.constant 0 : index
    %c0_9 = arith.constant 0 : index
    %c0_10 = arith.constant 0 : index
    %40 = vector.load %arg1[%c0_8, %c0_9, %c0_10] : memref<1x4x256xf32, #tpu.memory_space<vmem>>, vector<1x4x256xf32>
    %c0_11 = arith.constant 0 : index
    %c0_12 = arith.constant 0 : index
    %c0_13 = arith.constant 0 : index
    %41 = vector.load %arg2[%c0_11, %c0_12, %c0_13] : memref<1x4x256xf32, #tpu.memory_space<vmem>>, vector<1x4x256xf32>
    %42 = vector.extract_strided_slice %40 {offsets = [0, 0, 0], sizes = [1, 1, 256], strides = [1, 1, 1]} : vector<1x4x256xf32> to vector<1x1x256xf32>
    %43 = vector.shape_cast %42 : vector<1x1x256xf32> to vector<1x256xf32>
    %44 = vector.extract_strided_slice %40 {offsets = [0, 1, 0], sizes = [1, 1, 256], strides = [1, 1, 1]} : vector<1x4x256xf32> to vector<1x1x256xf32>
    %45 = vector.shape_cast %44 : vector<1x1x256xf32> to vector<1x256xf32>
    %46 = vector.extract_strided_slice %40 {offsets = [0, 2, 0], sizes = [1, 1, 256], strides = [1, 1, 1]} : vector<1x4x256xf32> to vector<1x1x256xf32>
    %47 = vector.shape_cast %46 : vector<1x1x256xf32> to vector<1x256xf32>
    %48 = vector.extract_strided_slice %40 {offsets = [0, 3, 0], sizes = [1, 1, 256], strides = [1, 1, 1]} : vector<1x4x256xf32> to vector<1x1x256xf32>
    %49 = vector.shape_cast %48 : vector<1x1x256xf32> to vector<1x256xf32>
    %50 = vector.broadcast %0 : f32 to vector<1x256xf32>
    %51 = arith.mulf %43, %50 : vector<1x256xf32>
    %52 = vector.broadcast %1 : f32 to vector<1x256xf32>
    %53 = arith.mulf %45, %52 : vector<1x256xf32>
    %54 = arith.addf %51, %53 : vector<1x256xf32>
    %55 = vector.broadcast %2 : f32 to vector<1x256xf32>
    %56 = arith.mulf %47, %55 : vector<1x256xf32>
    %57 = arith.addf %54, %56 : vector<1x256xf32>
    %58 = vector.broadcast %3 : f32 to vector<1x256xf32>
    %59 = arith.mulf %49, %58 : vector<1x256xf32>
    %60 = arith.addf %57, %59 : vector<1x256xf32>
    %61 = vector.broadcast %32 : f32 to vector<1x256xf32>
    %62 = arith.addf %60, %61 : vector<1x256xf32>
    %63 = vector.broadcast %4 : f32 to vector<1x256xf32>
    %64 = arith.mulf %43, %63 : vector<1x256xf32>
    %65 = vector.broadcast %5 : f32 to vector<1x256xf32>
    %66 = arith.mulf %45, %65 : vector<1x256xf32>
    %67 = arith.addf %64, %66 : vector<1x256xf32>
    %68 = vector.broadcast %6 : f32 to vector<1x256xf32>
    %69 = arith.mulf %47, %68 : vector<1x256xf32>
    %70 = arith.addf %67, %69 : vector<1x256xf32>
    %71 = vector.broadcast %7 : f32 to vector<1x256xf32>
    %72 = arith.mulf %49, %71 : vector<1x256xf32>
    %73 = arith.addf %70, %72 : vector<1x256xf32>
    %74 = vector.broadcast %33 : f32 to vector<1x256xf32>
    %75 = arith.addf %73, %74 : vector<1x256xf32>
    %76 = vector.broadcast %8 : f32 to vector<1x256xf32>
    %77 = arith.mulf %43, %76 : vector<1x256xf32>
    %78 = vector.broadcast %9 : f32 to vector<1x256xf32>
    %79 = arith.mulf %45, %78 : vector<1x256xf32>
    %80 = arith.addf %77, %79 : vector<1x256xf32>
    %81 = vector.broadcast %10 : f32 to vector<1x256xf32>
    %82 = arith.mulf %47, %81 : vector<1x256xf32>
    %83 = arith.addf %80, %82 : vector<1x256xf32>
    %84 = vector.broadcast %11 : f32 to vector<1x256xf32>
    %85 = arith.mulf %49, %84 : vector<1x256xf32>
    %86 = arith.addf %83, %85 : vector<1x256xf32>
    %87 = vector.broadcast %34 : f32 to vector<1x256xf32>
    %88 = arith.addf %86, %87 : vector<1x256xf32>
    %89 = vector.broadcast %12 : f32 to vector<1x256xf32>
    %90 = arith.mulf %43, %89 : vector<1x256xf32>
    %91 = vector.broadcast %13 : f32 to vector<1x256xf32>
    %92 = arith.mulf %45, %91 : vector<1x256xf32>
    %93 = arith.addf %90, %92 : vector<1x256xf32>
    %94 = vector.broadcast %14 : f32 to vector<1x256xf32>
    %95 = arith.mulf %47, %94 : vector<1x256xf32>
    %96 = arith.addf %93, %95 : vector<1x256xf32>
    %97 = vector.broadcast %15 : f32 to vector<1x256xf32>
    %98 = arith.mulf %49, %97 : vector<1x256xf32>
    %99 = arith.addf %96, %98 : vector<1x256xf32>
    %100 = vector.broadcast %35 : f32 to vector<1x256xf32>
    %101 = arith.addf %99, %100 : vector<1x256xf32>
    %102 = vector.broadcast %16 : f32 to vector<1x256xf32>
    %103 = arith.mulf %43, %102 : vector<1x256xf32>
    %104 = vector.broadcast %17 : f32 to vector<1x256xf32>
    %105 = arith.mulf %45, %104 : vector<1x256xf32>
    %106 = arith.addf %103, %105 : vector<1x256xf32>
    %107 = vector.broadcast %18 : f32 to vector<1x256xf32>
    %108 = arith.mulf %47, %107 : vector<1x256xf32>
    %109 = arith.addf %106, %108 : vector<1x256xf32>
    %110 = vector.broadcast %19 : f32 to vector<1x256xf32>
    %111 = arith.mulf %49, %110 : vector<1x256xf32>
    %112 = arith.addf %109, %111 : vector<1x256xf32>
    %113 = vector.broadcast %36 : f32 to vector<1x256xf32>
    %114 = arith.addf %112, %113 : vector<1x256xf32>
    %115 = vector.broadcast %20 : f32 to vector<1x256xf32>
    %116 = arith.mulf %43, %115 : vector<1x256xf32>
    %117 = vector.broadcast %21 : f32 to vector<1x256xf32>
    %118 = arith.mulf %45, %117 : vector<1x256xf32>
    %119 = arith.addf %116, %118 : vector<1x256xf32>
    %120 = vector.broadcast %22 : f32 to vector<1x256xf32>
    %121 = arith.mulf %47, %120 : vector<1x256xf32>
    %122 = arith.addf %119, %121 : vector<1x256xf32>
    %123 = vector.broadcast %23 : f32 to vector<1x256xf32>
    %124 = arith.mulf %49, %123 : vector<1x256xf32>
    %125 = arith.addf %122, %124 : vector<1x256xf32>
    %126 = vector.broadcast %37 : f32 to vector<1x256xf32>
    %127 = arith.addf %125, %126 : vector<1x256xf32>
    %128 = vector.broadcast %24 : f32 to vector<1x256xf32>
    %129 = arith.mulf %43, %128 : vector<1x256xf32>
    %130 = vector.broadcast %25 : f32 to vector<1x256xf32>
    %131 = arith.mulf %45, %130 : vector<1x256xf32>
    %132 = arith.addf %129, %131 : vector<1x256xf32>
    %133 = vector.broadcast %26 : f32 to vector<1x256xf32>
    %134 = arith.mulf %47, %133 : vector<1x256xf32>
    %135 = arith.addf %132, %134 : vector<1x256xf32>
    %136 = vector.broadcast %27 : f32 to vector<1x256xf32>
    %137 = arith.mulf %49, %136 : vector<1x256xf32>
    %138 = arith.addf %135, %137 : vector<1x256xf32>
    %139 = vector.broadcast %38 : f32 to vector<1x256xf32>
    %140 = arith.addf %138, %139 : vector<1x256xf32>
    %141 = vector.broadcast %28 : f32 to vector<1x256xf32>
    %142 = arith.mulf %43, %141 : vector<1x256xf32>
    %143 = vector.broadcast %29 : f32 to vector<1x256xf32>
    %144 = arith.mulf %45, %143 : vector<1x256xf32>
    %145 = arith.addf %142, %144 : vector<1x256xf32>
    %146 = vector.broadcast %30 : f32 to vector<1x256xf32>
    %147 = arith.mulf %47, %146 : vector<1x256xf32>
    %148 = arith.addf %145, %147 : vector<1x256xf32>
    %149 = vector.broadcast %31 : f32 to vector<1x256xf32>
    %150 = arith.mulf %49, %149 : vector<1x256xf32>
    %151 = arith.addf %148, %150 : vector<1x256xf32>
    %152 = vector.broadcast %39 : f32 to vector<1x256xf32>
    %153 = arith.addf %151, %152 : vector<1x256xf32>
    %154 = arith.maximumf %62, %75 : vector<1x256xf32>
    %155 = arith.maximumf %154, %88 : vector<1x256xf32>
    %156 = arith.maximumf %155, %101 : vector<1x256xf32>
    %157 = arith.maximumf %156, %114 : vector<1x256xf32>
    %158 = arith.maximumf %157, %127 : vector<1x256xf32>
    %159 = arith.maximumf %158, %140 : vector<1x256xf32>
    %160 = arith.maximumf %159, %153 : vector<1x256xf32>
    %161 = arith.subf %62, %160 : vector<1x256xf32>
    %162 = arith.subf %75, %160 : vector<1x256xf32>
    %163 = arith.subf %88, %160 : vector<1x256xf32>
    %164 = arith.subf %101, %160 : vector<1x256xf32>
    %165 = arith.subf %114, %160 : vector<1x256xf32>
    %166 = arith.subf %127, %160 : vector<1x256xf32>
    %167 = arith.subf %140, %160 : vector<1x256xf32>
    %168 = arith.subf %153, %160 : vector<1x256xf32>
    %169 = math.exp %161 : vector<1x256xf32>
    %170 = math.exp %162 : vector<1x256xf32>
    %171 = math.exp %163 : vector<1x256xf32>
    %172 = math.exp %164 : vector<1x256xf32>
    %173 = math.exp %165 : vector<1x256xf32>
    %174 = math.exp %166 : vector<1x256xf32>
    %175 = math.exp %167 : vector<1x256xf32>
    %176 = math.exp %168 : vector<1x256xf32>
    %177 = arith.addf %169, %170 : vector<1x256xf32>
    %178 = arith.addf %177, %171 : vector<1x256xf32>
    %179 = arith.addf %178, %172 : vector<1x256xf32>
    %180 = arith.addf %179, %173 : vector<1x256xf32>
    %181 = arith.addf %180, %174 : vector<1x256xf32>
    %182 = arith.addf %181, %175 : vector<1x256xf32>
    %183 = arith.addf %182, %176 : vector<1x256xf32>
    %cst = arith.constant 1.000000e+00 : f32
    %184 = vector.broadcast %cst : f32 to vector<1x256xf32>
    %185 = arith.divf %184, %183 : vector<1x256xf32>
    %186 = math.log %183 : vector<1x256xf32>
    %187 = arith.mulf %169, %185 : vector<1x256xf32>
    %188 = arith.mulf %170, %185 : vector<1x256xf32>
    %189 = arith.mulf %171, %185 : vector<1x256xf32>
    %190 = arith.mulf %172, %185 : vector<1x256xf32>
    %191 = arith.mulf %173, %185 : vector<1x256xf32>
    %192 = arith.mulf %174, %185 : vector<1x256xf32>
    %193 = arith.mulf %175, %185 : vector<1x256xf32>
    %194 = arith.mulf %176, %185 : vector<1x256xf32>
    %195 = arith.subf %161, %186 : vector<1x256xf32>
    %196 = arith.subf %162, %186 : vector<1x256xf32>
    %197 = arith.subf %163, %186 : vector<1x256xf32>
    %198 = arith.subf %164, %186 : vector<1x256xf32>
    %199 = arith.subf %165, %186 : vector<1x256xf32>
    %200 = arith.subf %166, %186 : vector<1x256xf32>
    %201 = arith.subf %167, %186 : vector<1x256xf32>
    %202 = arith.subf %168, %186 : vector<1x256xf32>
    %203 = vector.extract_strided_slice %41 {offsets = [0, 0, 0], sizes = [1, 1, 256], strides = [1, 1, 1]} : vector<1x4x256xf32> to vector<1x1x256xf32>
    %204 = vector.shape_cast %203 : vector<1x1x256xf32> to vector<1x256xf32>
    %205 = vector.extract_strided_slice %41 {offsets = [0, 1, 0], sizes = [1, 1, 256], strides = [1, 1, 1]} : vector<1x4x256xf32> to vector<1x1x256xf32>
    %206 = vector.shape_cast %205 : vector<1x1x256xf32> to vector<1x256xf32>
    %207 = vector.extract_strided_slice %41 {offsets = [0, 2, 0], sizes = [1, 1, 256], strides = [1, 1, 1]} : vector<1x4x256xf32> to vector<1x1x256xf32>
    %208 = vector.shape_cast %207 : vector<1x1x256xf32> to vector<1x256xf32>
    %209 = vector.extract_strided_slice %41 {offsets = [0, 3, 0], sizes = [1, 1, 256], strides = [1, 1, 1]} : vector<1x4x256xf32> to vector<1x1x256xf32>
    %210 = vector.shape_cast %209 : vector<1x1x256xf32> to vector<1x256xf32>
    %211 = arith.mulf %204, %204 : vector<1x256xf32>
    %cst_14 = arith.constant dense<0.000000e+00> : vector<1xf32>
    %212 = vector.multi_reduction <add>, %211, %cst_14 [1] : vector<1x256xf32> to vector<1xf32>
    %213 = vector.shape_cast %212 : vector<1xf32> to vector<1x1xf32>
    %214 = arith.mulf %206, %206 : vector<1x256xf32>
    %cst_15 = arith.constant dense<0.000000e+00> : vector<1xf32>
    %215 = vector.multi_reduction <add>, %214, %cst_15 [1] : vector<1x256xf32> to vector<1xf32>
    %216 = vector.shape_cast %215 : vector<1xf32> to vector<1x1xf32>
    %217 = arith.addf %213, %216 : vector<1x1xf32>
    %218 = arith.mulf %208, %208 : vector<1x256xf32>
    %cst_16 = arith.constant dense<0.000000e+00> : vector<1xf32>
    %219 = vector.multi_reduction <add>, %218, %cst_16 [1] : vector<1x256xf32> to vector<1xf32>
    %220 = vector.shape_cast %219 : vector<1xf32> to vector<1x1xf32>
    %221 = arith.addf %217, %220 : vector<1x1xf32>
    %222 = arith.mulf %210, %210 : vector<1x256xf32>
    %cst_17 = arith.constant dense<0.000000e+00> : vector<1xf32>
    %223 = vector.multi_reduction <add>, %222, %cst_17 [1] : vector<1x256xf32> to vector<1xf32>
    %224 = vector.shape_cast %223 : vector<1xf32> to vector<1x1xf32>
    %225 = arith.addf %221, %224 : vector<1x1xf32>
    %cst_18 = arith.constant 9.99999996E-13 : f32
    %226 = vector.broadcast %cst_18 : f32 to vector<1x1xf32>
    %227 = arith.addf %225, %226 : vector<1x1xf32>
    %228 = math.rsqrt %227 : vector<1x1xf32>
    %229 = vector.broadcast %228 : vector<1x1xf32> to vector<1x256xf32>
    %230 = arith.mulf %204, %229 : vector<1x256xf32>
    %231 = vector.broadcast %228 : vector<1x1xf32> to vector<1x256xf32>
    %232 = arith.mulf %206, %231 : vector<1x256xf32>
    %233 = vector.broadcast %228 : vector<1x1xf32> to vector<1x256xf32>
    %234 = arith.mulf %208, %233 : vector<1x256xf32>
    %235 = vector.broadcast %228 : vector<1x1xf32> to vector<1x256xf32>
    %236 = arith.mulf %210, %235 : vector<1x256xf32>
    %cst_19 = arith.constant 1.000000e+01 : f32
    %237 = vector.broadcast %cst_19 : f32 to vector<1x256xf32>
    %238 = arith.mulf %237, %230 : vector<1x256xf32>
    %239 = arith.addf %43, %238 : vector<1x256xf32>
    %cst_20 = arith.constant 1.000000e+01 : f32
    %240 = vector.broadcast %cst_20 : f32 to vector<1x256xf32>
    %241 = arith.mulf %240, %232 : vector<1x256xf32>
    %242 = arith.addf %45, %241 : vector<1x256xf32>
    %cst_21 = arith.constant 1.000000e+01 : f32
    %243 = vector.broadcast %cst_21 : f32 to vector<1x256xf32>
    %244 = arith.mulf %243, %234 : vector<1x256xf32>
    %245 = arith.addf %47, %244 : vector<1x256xf32>
    %cst_22 = arith.constant 1.000000e+01 : f32
    %246 = vector.broadcast %cst_22 : f32 to vector<1x256xf32>
    %247 = arith.mulf %246, %236 : vector<1x256xf32>
    %248 = arith.addf %49, %247 : vector<1x256xf32>
    %249 = vector.broadcast %0 : f32 to vector<1x256xf32>
    %250 = arith.mulf %239, %249 : vector<1x256xf32>
    %251 = vector.broadcast %1 : f32 to vector<1x256xf32>
    %252 = arith.mulf %242, %251 : vector<1x256xf32>
    %253 = arith.addf %250, %252 : vector<1x256xf32>
    %254 = vector.broadcast %2 : f32 to vector<1x256xf32>
    %255 = arith.mulf %245, %254 : vector<1x256xf32>
    %256 = arith.addf %253, %255 : vector<1x256xf32>
    %257 = vector.broadcast %3 : f32 to vector<1x256xf32>
    %258 = arith.mulf %248, %257 : vector<1x256xf32>
    %259 = arith.addf %256, %258 : vector<1x256xf32>
    %260 = vector.broadcast %32 : f32 to vector<1x256xf32>
    %261 = arith.addf %259, %260 : vector<1x256xf32>
    %262 = vector.broadcast %4 : f32 to vector<1x256xf32>
    %263 = arith.mulf %239, %262 : vector<1x256xf32>
    %264 = vector.broadcast %5 : f32 to vector<1x256xf32>
    %265 = arith.mulf %242, %264 : vector<1x256xf32>
    %266 = arith.addf %263, %265 : vector<1x256xf32>
    %267 = vector.broadcast %6 : f32 to vector<1x256xf32>
    %268 = arith.mulf %245, %267 : vector<1x256xf32>
    %269 = arith.addf %266, %268 : vector<1x256xf32>
    %270 = vector.broadcast %7 : f32 to vector<1x256xf32>
    %271 = arith.mulf %248, %270 : vector<1x256xf32>
    %272 = arith.addf %269, %271 : vector<1x256xf32>
    %273 = vector.broadcast %33 : f32 to vector<1x256xf32>
    %274 = arith.addf %272, %273 : vector<1x256xf32>
    %275 = vector.broadcast %8 : f32 to vector<1x256xf32>
    %276 = arith.mulf %239, %275 : vector<1x256xf32>
    %277 = vector.broadcast %9 : f32 to vector<1x256xf32>
    %278 = arith.mulf %242, %277 : vector<1x256xf32>
    %279 = arith.addf %276, %278 : vector<1x256xf32>
    %280 = vector.broadcast %10 : f32 to vector<1x256xf32>
    %281 = arith.mulf %245, %280 : vector<1x256xf32>
    %282 = arith.addf %279, %281 : vector<1x256xf32>
    %283 = vector.broadcast %11 : f32 to vector<1x256xf32>
    %284 = arith.mulf %248, %283 : vector<1x256xf32>
    %285 = arith.addf %282, %284 : vector<1x256xf32>
    %286 = vector.broadcast %34 : f32 to vector<1x256xf32>
    %287 = arith.addf %285, %286 : vector<1x256xf32>
    %288 = vector.broadcast %12 : f32 to vector<1x256xf32>
    %289 = arith.mulf %239, %288 : vector<1x256xf32>
    %290 = vector.broadcast %13 : f32 to vector<1x256xf32>
    %291 = arith.mulf %242, %290 : vector<1x256xf32>
    %292 = arith.addf %289, %291 : vector<1x256xf32>
    %293 = vector.broadcast %14 : f32 to vector<1x256xf32>
    %294 = arith.mulf %245, %293 : vector<1x256xf32>
    %295 = arith.addf %292, %294 : vector<1x256xf32>
    %296 = vector.broadcast %15 : f32 to vector<1x256xf32>
    %297 = arith.mulf %248, %296 : vector<1x256xf32>
    %298 = arith.addf %295, %297 : vector<1x256xf32>
    %299 = vector.broadcast %35 : f32 to vector<1x256xf32>
    %300 = arith.addf %298, %299 : vector<1x256xf32>
    %301 = vector.broadcast %16 : f32 to vector<1x256xf32>
    %302 = arith.mulf %239, %301 : vector<1x256xf32>
    %303 = vector.broadcast %17 : f32 to vector<1x256xf32>
    %304 = arith.mulf %242, %303 : vector<1x256xf32>
    %305 = arith.addf %302, %304 : vector<1x256xf32>
    %306 = vector.broadcast %18 : f32 to vector<1x256xf32>
    %307 = arith.mulf %245, %306 : vector<1x256xf32>
    %308 = arith.addf %305, %307 : vector<1x256xf32>
    %309 = vector.broadcast %19 : f32 to vector<1x256xf32>
    %310 = arith.mulf %248, %309 : vector<1x256xf32>
    %311 = arith.addf %308, %310 : vector<1x256xf32>
    %312 = vector.broadcast %36 : f32 to vector<1x256xf32>
    %313 = arith.addf %311, %312 : vector<1x256xf32>
    %314 = vector.broadcast %20 : f32 to vector<1x256xf32>
    %315 = arith.mulf %239, %314 : vector<1x256xf32>
    %316 = vector.broadcast %21 : f32 to vector<1x256xf32>
    %317 = arith.mulf %242, %316 : vector<1x256xf32>
    %318 = arith.addf %315, %317 : vector<1x256xf32>
    %319 = vector.broadcast %22 : f32 to vector<1x256xf32>
    %320 = arith.mulf %245, %319 : vector<1x256xf32>
    %321 = arith.addf %318, %320 : vector<1x256xf32>
    %322 = vector.broadcast %23 : f32 to vector<1x256xf32>
    %323 = arith.mulf %248, %322 : vector<1x256xf32>
    %324 = arith.addf %321, %323 : vector<1x256xf32>
    %325 = vector.broadcast %37 : f32 to vector<1x256xf32>
    %326 = arith.addf %324, %325 : vector<1x256xf32>
    %327 = vector.broadcast %24 : f32 to vector<1x256xf32>
    %328 = arith.mulf %239, %327 : vector<1x256xf32>
    %329 = vector.broadcast %25 : f32 to vector<1x256xf32>
    %330 = arith.mulf %242, %329 : vector<1x256xf32>
    %331 = arith.addf %328, %330 : vector<1x256xf32>
    %332 = vector.broadcast %26 : f32 to vector<1x256xf32>
    %333 = arith.mulf %245, %332 : vector<1x256xf32>
    %334 = arith.addf %331, %333 : vector<1x256xf32>
    %335 = vector.broadcast %27 : f32 to vector<1x256xf32>
    %336 = arith.mulf %248, %335 : vector<1x256xf32>
    %337 = arith.addf %334, %336 : vector<1x256xf32>
    %338 = vector.broadcast %38 : f32 to vector<1x256xf32>
    %339 = arith.addf %337, %338 : vector<1x256xf32>
    %340 = vector.broadcast %28 : f32 to vector<1x256xf32>
    %341 = arith.mulf %239, %340 : vector<1x256xf32>
    %342 = vector.broadcast %29 : f32 to vector<1x256xf32>
    %343 = arith.mulf %242, %342 : vector<1x256xf32>
    %344 = arith.addf %341, %343 : vector<1x256xf32>
    %345 = vector.broadcast %30 : f32 to vector<1x256xf32>
    %346 = arith.mulf %245, %345 : vector<1x256xf32>
    %347 = arith.addf %344, %346 : vector<1x256xf32>
    %348 = vector.broadcast %31 : f32 to vector<1x256xf32>
    %349 = arith.mulf %248, %348 : vector<1x256xf32>
    %350 = arith.addf %347, %349 : vector<1x256xf32>
    %351 = vector.broadcast %39 : f32 to vector<1x256xf32>
    %352 = arith.addf %350, %351 : vector<1x256xf32>
    %353 = arith.maximumf %261, %274 : vector<1x256xf32>
    %354 = arith.maximumf %353, %287 : vector<1x256xf32>
    %355 = arith.maximumf %354, %300 : vector<1x256xf32>
    %356 = arith.maximumf %355, %313 : vector<1x256xf32>
    %357 = arith.maximumf %356, %326 : vector<1x256xf32>
    %358 = arith.maximumf %357, %339 : vector<1x256xf32>
    %359 = arith.maximumf %358, %352 : vector<1x256xf32>
    %360 = arith.subf %261, %359 : vector<1x256xf32>
    %361 = arith.subf %274, %359 : vector<1x256xf32>
    %362 = arith.subf %287, %359 : vector<1x256xf32>
    %363 = arith.subf %300, %359 : vector<1x256xf32>
    %364 = arith.subf %313, %359 : vector<1x256xf32>
    %365 = arith.subf %326, %359 : vector<1x256xf32>
    %366 = arith.subf %339, %359 : vector<1x256xf32>
    %367 = arith.subf %352, %359 : vector<1x256xf32>
    %368 = math.exp %360 : vector<1x256xf32>
    %369 = math.exp %361 : vector<1x256xf32>
    %370 = math.exp %362 : vector<1x256xf32>
    %371 = math.exp %363 : vector<1x256xf32>
    %372 = math.exp %364 : vector<1x256xf32>
    %373 = math.exp %365 : vector<1x256xf32>
    %374 = math.exp %366 : vector<1x256xf32>
    %375 = math.exp %367 : vector<1x256xf32>
    %376 = arith.addf %368, %369 : vector<1x256xf32>
    %377 = arith.addf %376, %370 : vector<1x256xf32>
    %378 = arith.addf %377, %371 : vector<1x256xf32>
    %379 = arith.addf %378, %372 : vector<1x256xf32>
    %380 = arith.addf %379, %373 : vector<1x256xf32>
    %381 = arith.addf %380, %374 : vector<1x256xf32>
    %382 = arith.addf %381, %375 : vector<1x256xf32>
    %383 = tpu.reciprocal %382 {approx = true} : vector<1x256xf32> -> vector<1x256xf32>
    %384 = arith.mulf %368, %383 : vector<1x256xf32>
    %385 = arith.mulf %369, %383 : vector<1x256xf32>
    %386 = arith.mulf %370, %383 : vector<1x256xf32>
    %387 = arith.mulf %371, %383 : vector<1x256xf32>
    %388 = arith.mulf %372, %383 : vector<1x256xf32>
    %389 = arith.mulf %373, %383 : vector<1x256xf32>
    %390 = arith.mulf %374, %383 : vector<1x256xf32>
    %391 = arith.mulf %375, %383 : vector<1x256xf32>
    %cst_23 = arith.constant 1.000000e-16 : f32
    %392 = vector.broadcast %cst_23 : f32 to vector<1x256xf32>
    %393 = arith.addf %384, %392 : vector<1x256xf32>
    %394 = tpu.reciprocal %393 {approx = true} : vector<1x256xf32> -> vector<1x256xf32>
    %395 = arith.mulf %187, %394 : vector<1x256xf32>
    %cst_24 = arith.constant 0.000000e+00 : f32
    %396 = vector.broadcast %cst_24 : f32 to vector<1x256xf32>
    %397 = arith.subf %396, %395 : vector<1x256xf32>
    %cst_25 = arith.constant 0.001953125 : f32
    %398 = vector.broadcast %cst_25 : f32 to vector<1x256xf32>
    %399 = arith.mulf %397, %398 : vector<1x256xf32>
    %cst_26 = arith.constant 1.000000e-16 : f32
    %400 = vector.broadcast %cst_26 : f32 to vector<1x256xf32>
    %401 = arith.addf %385, %400 : vector<1x256xf32>
    %402 = tpu.reciprocal %401 {approx = true} : vector<1x256xf32> -> vector<1x256xf32>
    %403 = arith.mulf %188, %402 : vector<1x256xf32>
    %cst_27 = arith.constant 0.000000e+00 : f32
    %404 = vector.broadcast %cst_27 : f32 to vector<1x256xf32>
    %405 = arith.subf %404, %403 : vector<1x256xf32>
    %cst_28 = arith.constant 0.001953125 : f32
    %406 = vector.broadcast %cst_28 : f32 to vector<1x256xf32>
    %407 = arith.mulf %405, %406 : vector<1x256xf32>
    %cst_29 = arith.constant 1.000000e-16 : f32
    %408 = vector.broadcast %cst_29 : f32 to vector<1x256xf32>
    %409 = arith.addf %386, %408 : vector<1x256xf32>
    %410 = tpu.reciprocal %409 {approx = true} : vector<1x256xf32> -> vector<1x256xf32>
    %411 = arith.mulf %189, %410 : vector<1x256xf32>
    %cst_30 = arith.constant 0.000000e+00 : f32
    %412 = vector.broadcast %cst_30 : f32 to vector<1x256xf32>
    %413 = arith.subf %412, %411 : vector<1x256xf32>
    %cst_31 = arith.constant 0.001953125 : f32
    %414 = vector.broadcast %cst_31 : f32 to vector<1x256xf32>
    %415 = arith.mulf %413, %414 : vector<1x256xf32>
    %cst_32 = arith.constant 1.000000e-16 : f32
    %416 = vector.broadcast %cst_32 : f32 to vector<1x256xf32>
    %417 = arith.addf %387, %416 : vector<1x256xf32>
    %418 = tpu.reciprocal %417 {approx = true} : vector<1x256xf32> -> vector<1x256xf32>
    %419 = arith.mulf %190, %418 : vector<1x256xf32>
    %cst_33 = arith.constant 0.000000e+00 : f32
    %420 = vector.broadcast %cst_33 : f32 to vector<1x256xf32>
    %421 = arith.subf %420, %419 : vector<1x256xf32>
    %cst_34 = arith.constant 0.001953125 : f32
    %422 = vector.broadcast %cst_34 : f32 to vector<1x256xf32>
    %423 = arith.mulf %421, %422 : vector<1x256xf32>
    %cst_35 = arith.constant 1.000000e-16 : f32
    %424 = vector.broadcast %cst_35 : f32 to vector<1x256xf32>
    %425 = arith.addf %388, %424 : vector<1x256xf32>
    %426 = tpu.reciprocal %425 {approx = true} : vector<1x256xf32> -> vector<1x256xf32>
    %427 = arith.mulf %191, %426 : vector<1x256xf32>
    %cst_36 = arith.constant 0.000000e+00 : f32
    %428 = vector.broadcast %cst_36 : f32 to vector<1x256xf32>
    %429 = arith.subf %428, %427 : vector<1x256xf32>
    %cst_37 = arith.constant 0.001953125 : f32
    %430 = vector.broadcast %cst_37 : f32 to vector<1x256xf32>
    %431 = arith.mulf %429, %430 : vector<1x256xf32>
    %cst_38 = arith.constant 1.000000e-16 : f32
    %432 = vector.broadcast %cst_38 : f32 to vector<1x256xf32>
    %433 = arith.addf %389, %432 : vector<1x256xf32>
    %434 = tpu.reciprocal %433 {approx = true} : vector<1x256xf32> -> vector<1x256xf32>
    %435 = arith.mulf %192, %434 : vector<1x256xf32>
    %cst_39 = arith.constant 0.000000e+00 : f32
    %436 = vector.broadcast %cst_39 : f32 to vector<1x256xf32>
    %437 = arith.subf %436, %435 : vector<1x256xf32>
    %cst_40 = arith.constant 0.001953125 : f32
    %438 = vector.broadcast %cst_40 : f32 to vector<1x256xf32>
    %439 = arith.mulf %437, %438 : vector<1x256xf32>
    %cst_41 = arith.constant 1.000000e-16 : f32
    %440 = vector.broadcast %cst_41 : f32 to vector<1x256xf32>
    %441 = arith.addf %390, %440 : vector<1x256xf32>
    %442 = tpu.reciprocal %441 {approx = true} : vector<1x256xf32> -> vector<1x256xf32>
    %443 = arith.mulf %193, %442 : vector<1x256xf32>
    %cst_42 = arith.constant 0.000000e+00 : f32
    %444 = vector.broadcast %cst_42 : f32 to vector<1x256xf32>
    %445 = arith.subf %444, %443 : vector<1x256xf32>
    %cst_43 = arith.constant 0.001953125 : f32
    %446 = vector.broadcast %cst_43 : f32 to vector<1x256xf32>
    %447 = arith.mulf %445, %446 : vector<1x256xf32>
    %cst_44 = arith.constant 1.000000e-16 : f32
    %448 = vector.broadcast %cst_44 : f32 to vector<1x256xf32>
    %449 = arith.addf %391, %448 : vector<1x256xf32>
    %450 = tpu.reciprocal %449 {approx = true} : vector<1x256xf32> -> vector<1x256xf32>
    %451 = arith.mulf %194, %450 : vector<1x256xf32>
    %cst_45 = arith.constant 0.000000e+00 : f32
    %452 = vector.broadcast %cst_45 : f32 to vector<1x256xf32>
    %453 = arith.subf %452, %451 : vector<1x256xf32>
    %cst_46 = arith.constant 0.001953125 : f32
    %454 = vector.broadcast %cst_46 : f32 to vector<1x256xf32>
    %455 = arith.mulf %453, %454 : vector<1x256xf32>
    %456 = arith.mulf %399, %384 : vector<1x256xf32>
    %457 = arith.mulf %407, %385 : vector<1x256xf32>
    %458 = arith.addf %456, %457 : vector<1x256xf32>
    %459 = arith.mulf %415, %386 : vector<1x256xf32>
    %460 = arith.addf %458, %459 : vector<1x256xf32>
    %461 = arith.mulf %423, %387 : vector<1x256xf32>
    %462 = arith.addf %460, %461 : vector<1x256xf32>
    %463 = arith.mulf %431, %388 : vector<1x256xf32>
    %464 = arith.addf %462, %463 : vector<1x256xf32>
    %465 = arith.mulf %439, %389 : vector<1x256xf32>
    %466 = arith.addf %464, %465 : vector<1x256xf32>
    %467 = arith.mulf %447, %390 : vector<1x256xf32>
    %468 = arith.addf %466, %467 : vector<1x256xf32>
    %469 = arith.mulf %455, %391 : vector<1x256xf32>
    %470 = arith.addf %468, %469 : vector<1x256xf32>
    %471 = arith.subf %399, %470 : vector<1x256xf32>
    %472 = arith.mulf %384, %471 : vector<1x256xf32>
    %473 = arith.subf %407, %470 : vector<1x256xf32>
    %474 = arith.mulf %385, %473 : vector<1x256xf32>
    %475 = arith.subf %415, %470 : vector<1x256xf32>
    %476 = arith.mulf %386, %475 : vector<1x256xf32>
    %477 = arith.subf %423, %470 : vector<1x256xf32>
    %478 = arith.mulf %387, %477 : vector<1x256xf32>
    %479 = arith.subf %431, %470 : vector<1x256xf32>
    %480 = arith.mulf %388, %479 : vector<1x256xf32>
    %481 = arith.subf %439, %470 : vector<1x256xf32>
    %482 = arith.mulf %389, %481 : vector<1x256xf32>
    %483 = arith.subf %447, %470 : vector<1x256xf32>
    %484 = arith.mulf %390, %483 : vector<1x256xf32>
    %485 = arith.subf %455, %470 : vector<1x256xf32>
    %486 = arith.mulf %391, %485 : vector<1x256xf32>
    %487 = vector.broadcast %0 : f32 to vector<1x256xf32>
    %488 = arith.mulf %472, %487 : vector<1x256xf32>
    %489 = vector.broadcast %4 : f32 to vector<1x256xf32>
    %490 = arith.mulf %474, %489 : vector<1x256xf32>
    %491 = arith.addf %488, %490 : vector<1x256xf32>
    %492 = vector.broadcast %8 : f32 to vector<1x256xf32>
    %493 = arith.mulf %476, %492 : vector<1x256xf32>
    %494 = arith.addf %491, %493 : vector<1x256xf32>
    %495 = vector.broadcast %12 : f32 to vector<1x256xf32>
    %496 = arith.mulf %478, %495 : vector<1x256xf32>
    %497 = arith.addf %494, %496 : vector<1x256xf32>
    %498 = vector.broadcast %16 : f32 to vector<1x256xf32>
    %499 = arith.mulf %480, %498 : vector<1x256xf32>
    %500 = arith.addf %497, %499 : vector<1x256xf32>
    %501 = vector.broadcast %20 : f32 to vector<1x256xf32>
    %502 = arith.mulf %482, %501 : vector<1x256xf32>
    %503 = arith.addf %500, %502 : vector<1x256xf32>
    %504 = vector.broadcast %24 : f32 to vector<1x256xf32>
    %505 = arith.mulf %484, %504 : vector<1x256xf32>
    %506 = arith.addf %503, %505 : vector<1x256xf32>
    %507 = vector.broadcast %28 : f32 to vector<1x256xf32>
    %508 = arith.mulf %486, %507 : vector<1x256xf32>
    %509 = arith.addf %506, %508 : vector<1x256xf32>
    %cst_47 = arith.constant 1.000000e+01 : f32
    %510 = vector.broadcast %cst_47 : f32 to vector<1x256xf32>
    %511 = arith.mulf %510, %509 : vector<1x256xf32>
    %512 = vector.broadcast %1 : f32 to vector<1x256xf32>
    %513 = arith.mulf %472, %512 : vector<1x256xf32>
    %514 = vector.broadcast %5 : f32 to vector<1x256xf32>
    %515 = arith.mulf %474, %514 : vector<1x256xf32>
    %516 = arith.addf %513, %515 : vector<1x256xf32>
    %517 = vector.broadcast %9 : f32 to vector<1x256xf32>
    %518 = arith.mulf %476, %517 : vector<1x256xf32>
    %519 = arith.addf %516, %518 : vector<1x256xf32>
    %520 = vector.broadcast %13 : f32 to vector<1x256xf32>
    %521 = arith.mulf %478, %520 : vector<1x256xf32>
    %522 = arith.addf %519, %521 : vector<1x256xf32>
    %523 = vector.broadcast %17 : f32 to vector<1x256xf32>
    %524 = arith.mulf %480, %523 : vector<1x256xf32>
    %525 = arith.addf %522, %524 : vector<1x256xf32>
    %526 = vector.broadcast %21 : f32 to vector<1x256xf32>
    %527 = arith.mulf %482, %526 : vector<1x256xf32>
    %528 = arith.addf %525, %527 : vector<1x256xf32>
    %529 = vector.broadcast %25 : f32 to vector<1x256xf32>
    %530 = arith.mulf %484, %529 : vector<1x256xf32>
    %531 = arith.addf %528, %530 : vector<1x256xf32>
    %532 = vector.broadcast %29 : f32 to vector<1x256xf32>
    %533 = arith.mulf %486, %532 : vector<1x256xf32>
    %534 = arith.addf %531, %533 : vector<1x256xf32>
    %cst_48 = arith.constant 1.000000e+01 : f32
    %535 = vector.broadcast %cst_48 : f32 to vector<1x256xf32>
    %536 = arith.mulf %535, %534 : vector<1x256xf32>
    %537 = vector.broadcast %2 : f32 to vector<1x256xf32>
    %538 = arith.mulf %472, %537 : vector<1x256xf32>
    %539 = vector.broadcast %6 : f32 to vector<1x256xf32>
    %540 = arith.mulf %474, %539 : vector<1x256xf32>
    %541 = arith.addf %538, %540 : vector<1x256xf32>
    %542 = vector.broadcast %10 : f32 to vector<1x256xf32>
    %543 = arith.mulf %476, %542 : vector<1x256xf32>
    %544 = arith.addf %541, %543 : vector<1x256xf32>
    %545 = vector.broadcast %14 : f32 to vector<1x256xf32>
    %546 = arith.mulf %478, %545 : vector<1x256xf32>
    %547 = arith.addf %544, %546 : vector<1x256xf32>
    %548 = vector.broadcast %18 : f32 to vector<1x256xf32>
    %549 = arith.mulf %480, %548 : vector<1x256xf32>
    %550 = arith.addf %547, %549 : vector<1x256xf32>
    %551 = vector.broadcast %22 : f32 to vector<1x256xf32>
    %552 = arith.mulf %482, %551 : vector<1x256xf32>
    %553 = arith.addf %550, %552 : vector<1x256xf32>
    %554 = vector.broadcast %26 : f32 to vector<1x256xf32>
    %555 = arith.mulf %484, %554 : vector<1x256xf32>
    %556 = arith.addf %553, %555 : vector<1x256xf32>
    %557 = vector.broadcast %30 : f32 to vector<1x256xf32>
    %558 = arith.mulf %486, %557 : vector<1x256xf32>
    %559 = arith.addf %556, %558 : vector<1x256xf32>
    %cst_49 = arith.constant 1.000000e+01 : f32
    %560 = vector.broadcast %cst_49 : f32 to vector<1x256xf32>
    %561 = arith.mulf %560, %559 : vector<1x256xf32>
    %562 = vector.broadcast %3 : f32 to vector<1x256xf32>
    %563 = arith.mulf %472, %562 : vector<1x256xf32>
    %564 = vector.broadcast %7 : f32 to vector<1x256xf32>
    %565 = arith.mulf %474, %564 : vector<1x256xf32>
    %566 = arith.addf %563, %565 : vector<1x256xf32>
    %567 = vector.broadcast %11 : f32 to vector<1x256xf32>
    %568 = arith.mulf %476, %567 : vector<1x256xf32>
    %569 = arith.addf %566, %568 : vector<1x256xf32>
    %570 = vector.broadcast %15 : f32 to vector<1x256xf32>
    %571 = arith.mulf %478, %570 : vector<1x256xf32>
    %572 = arith.addf %569, %571 : vector<1x256xf32>
    %573 = vector.broadcast %19 : f32 to vector<1x256xf32>
    %574 = arith.mulf %480, %573 : vector<1x256xf32>
    %575 = arith.addf %572, %574 : vector<1x256xf32>
    %576 = vector.broadcast %23 : f32 to vector<1x256xf32>
    %577 = arith.mulf %482, %576 : vector<1x256xf32>
    %578 = arith.addf %575, %577 : vector<1x256xf32>
    %579 = vector.broadcast %27 : f32 to vector<1x256xf32>
    %580 = arith.mulf %484, %579 : vector<1x256xf32>
    %581 = arith.addf %578, %580 : vector<1x256xf32>
    %582 = vector.broadcast %31 : f32 to vector<1x256xf32>
    %583 = arith.mulf %486, %582 : vector<1x256xf32>
    %584 = arith.addf %581, %583 : vector<1x256xf32>
    %cst_50 = arith.constant 1.000000e+01 : f32
    %585 = vector.broadcast %cst_50 : f32 to vector<1x256xf32>
    %586 = arith.mulf %585, %584 : vector<1x256xf32>
    %587 = arith.mulf %511, %511 : vector<1x256xf32>
    %cst_51 = arith.constant dense<0.000000e+00> : vector<1xf32>
    %588 = vector.multi_reduction <add>, %587, %cst_51 [1] : vector<1x256xf32> to vector<1xf32>
    %589 = vector.shape_cast %588 : vector<1xf32> to vector<1x1xf32>
    %590 = arith.mulf %536, %536 : vector<1x256xf32>
    %cst_52 = arith.constant dense<0.000000e+00> : vector<1xf32>
    %591 = vector.multi_reduction <add>, %590, %cst_52 [1] : vector<1x256xf32> to vector<1xf32>
    %592 = vector.shape_cast %591 : vector<1xf32> to vector<1x1xf32>
    %593 = arith.addf %589, %592 : vector<1x1xf32>
    %594 = arith.mulf %561, %561 : vector<1x256xf32>
    %cst_53 = arith.constant dense<0.000000e+00> : vector<1xf32>
    %595 = vector.multi_reduction <add>, %594, %cst_53 [1] : vector<1x256xf32> to vector<1xf32>
    %596 = vector.shape_cast %595 : vector<1xf32> to vector<1x1xf32>
    %597 = arith.addf %593, %596 : vector<1x1xf32>
    %598 = arith.mulf %586, %586 : vector<1x256xf32>
    %cst_54 = arith.constant dense<0.000000e+00> : vector<1xf32>
    %599 = vector.multi_reduction <add>, %598, %cst_54 [1] : vector<1x256xf32> to vector<1xf32>
    %600 = vector.shape_cast %599 : vector<1xf32> to vector<1x1xf32>
    %601 = arith.addf %597, %600 : vector<1x1xf32>
    %cst_55 = arith.constant 9.99999996E-13 : f32
    %602 = vector.broadcast %cst_55 : f32 to vector<1x1xf32>
    %603 = arith.addf %601, %602 : vector<1x1xf32>
    %604 = math.rsqrt %603 : vector<1x1xf32>
    %605 = vector.broadcast %604 : vector<1x1xf32> to vector<1x256xf32>
    %606 = arith.mulf %511, %605 : vector<1x256xf32>
    %607 = vector.broadcast %604 : vector<1x1xf32> to vector<1x256xf32>
    %608 = arith.mulf %536, %607 : vector<1x256xf32>
    %609 = vector.broadcast %604 : vector<1x1xf32> to vector<1x256xf32>
    %610 = arith.mulf %561, %609 : vector<1x256xf32>
    %611 = vector.broadcast %604 : vector<1x1xf32> to vector<1x256xf32>
    %612 = arith.mulf %586, %611 : vector<1x256xf32>
    %cst_56 = arith.constant 2.500000e-01 : f32
    %613 = vector.broadcast %cst_56 : f32 to vector<1x256xf32>
    %614 = arith.mulf %606, %613 : vector<1x256xf32>
    %cst_57 = arith.constant 2.500000e-01 : f32
    %615 = vector.broadcast %cst_57 : f32 to vector<1x256xf32>
    %616 = arith.mulf %608, %615 : vector<1x256xf32>
    %cst_58 = arith.constant 2.500000e-01 : f32
    %617 = vector.broadcast %cst_58 : f32 to vector<1x256xf32>
    %618 = arith.mulf %610, %617 : vector<1x256xf32>
    %cst_59 = arith.constant 2.500000e-01 : f32
    %619 = vector.broadcast %cst_59 : f32 to vector<1x256xf32>
    %620 = arith.mulf %612, %619 : vector<1x256xf32>
    %621 = arith.addf %43, %614 : vector<1x256xf32>
    %622 = arith.addf %45, %616 : vector<1x256xf32>
    %623 = arith.addf %47, %618 : vector<1x256xf32>
    %624 = arith.addf %49, %620 : vector<1x256xf32>
    %625 = vector.broadcast %0 : f32 to vector<1x256xf32>
    %626 = arith.mulf %621, %625 : vector<1x256xf32>
    %627 = vector.broadcast %1 : f32 to vector<1x256xf32>
    %628 = arith.mulf %622, %627 : vector<1x256xf32>
    %629 = arith.addf %626, %628 : vector<1x256xf32>
    %630 = vector.broadcast %2 : f32 to vector<1x256xf32>
    %631 = arith.mulf %623, %630 : vector<1x256xf32>
    %632 = arith.addf %629, %631 : vector<1x256xf32>
    %633 = vector.broadcast %3 : f32 to vector<1x256xf32>
    %634 = arith.mulf %624, %633 : vector<1x256xf32>
    %635 = arith.addf %632, %634 : vector<1x256xf32>
    %636 = vector.broadcast %32 : f32 to vector<1x256xf32>
    %637 = arith.addf %635, %636 : vector<1x256xf32>
    %638 = vector.broadcast %4 : f32 to vector<1x256xf32>
    %639 = arith.mulf %621, %638 : vector<1x256xf32>
    %640 = vector.broadcast %5 : f32 to vector<1x256xf32>
    %641 = arith.mulf %622, %640 : vector<1x256xf32>
    %642 = arith.addf %639, %641 : vector<1x256xf32>
    %643 = vector.broadcast %6 : f32 to vector<1x256xf32>
    %644 = arith.mulf %623, %643 : vector<1x256xf32>
    %645 = arith.addf %642, %644 : vector<1x256xf32>
    %646 = vector.broadcast %7 : f32 to vector<1x256xf32>
    %647 = arith.mulf %624, %646 : vector<1x256xf32>
    %648 = arith.addf %645, %647 : vector<1x256xf32>
    %649 = vector.broadcast %33 : f32 to vector<1x256xf32>
    %650 = arith.addf %648, %649 : vector<1x256xf32>
    %651 = vector.broadcast %8 : f32 to vector<1x256xf32>
    %652 = arith.mulf %621, %651 : vector<1x256xf32>
    %653 = vector.broadcast %9 : f32 to vector<1x256xf32>
    %654 = arith.mulf %622, %653 : vector<1x256xf32>
    %655 = arith.addf %652, %654 : vector<1x256xf32>
    %656 = vector.broadcast %10 : f32 to vector<1x256xf32>
    %657 = arith.mulf %623, %656 : vector<1x256xf32>
    %658 = arith.addf %655, %657 : vector<1x256xf32>
    %659 = vector.broadcast %11 : f32 to vector<1x256xf32>
    %660 = arith.mulf %624, %659 : vector<1x256xf32>
    %661 = arith.addf %658, %660 : vector<1x256xf32>
    %662 = vector.broadcast %34 : f32 to vector<1x256xf32>
    %663 = arith.addf %661, %662 : vector<1x256xf32>
    %664 = vector.broadcast %12 : f32 to vector<1x256xf32>
    %665 = arith.mulf %621, %664 : vector<1x256xf32>
    %666 = vector.broadcast %13 : f32 to vector<1x256xf32>
    %667 = arith.mulf %622, %666 : vector<1x256xf32>
    %668 = arith.addf %665, %667 : vector<1x256xf32>
    %669 = vector.broadcast %14 : f32 to vector<1x256xf32>
    %670 = arith.mulf %623, %669 : vector<1x256xf32>
    %671 = arith.addf %668, %670 : vector<1x256xf32>
    %672 = vector.broadcast %15 : f32 to vector<1x256xf32>
    %673 = arith.mulf %624, %672 : vector<1x256xf32>
    %674 = arith.addf %671, %673 : vector<1x256xf32>
    %675 = vector.broadcast %35 : f32 to vector<1x256xf32>
    %676 = arith.addf %674, %675 : vector<1x256xf32>
    %677 = vector.broadcast %16 : f32 to vector<1x256xf32>
    %678 = arith.mulf %621, %677 : vector<1x256xf32>
    %679 = vector.broadcast %17 : f32 to vector<1x256xf32>
    %680 = arith.mulf %622, %679 : vector<1x256xf32>
    %681 = arith.addf %678, %680 : vector<1x256xf32>
    %682 = vector.broadcast %18 : f32 to vector<1x256xf32>
    %683 = arith.mulf %623, %682 : vector<1x256xf32>
    %684 = arith.addf %681, %683 : vector<1x256xf32>
    %685 = vector.broadcast %19 : f32 to vector<1x256xf32>
    %686 = arith.mulf %624, %685 : vector<1x256xf32>
    %687 = arith.addf %684, %686 : vector<1x256xf32>
    %688 = vector.broadcast %36 : f32 to vector<1x256xf32>
    %689 = arith.addf %687, %688 : vector<1x256xf32>
    %690 = vector.broadcast %20 : f32 to vector<1x256xf32>
    %691 = arith.mulf %621, %690 : vector<1x256xf32>
    %692 = vector.broadcast %21 : f32 to vector<1x256xf32>
    %693 = arith.mulf %622, %692 : vector<1x256xf32>
    %694 = arith.addf %691, %693 : vector<1x256xf32>
    %695 = vector.broadcast %22 : f32 to vector<1x256xf32>
    %696 = arith.mulf %623, %695 : vector<1x256xf32>
    %697 = arith.addf %694, %696 : vector<1x256xf32>
    %698 = vector.broadcast %23 : f32 to vector<1x256xf32>
    %699 = arith.mulf %624, %698 : vector<1x256xf32>
    %700 = arith.addf %697, %699 : vector<1x256xf32>
    %701 = vector.broadcast %37 : f32 to vector<1x256xf32>
    %702 = arith.addf %700, %701 : vector<1x256xf32>
    %703 = vector.broadcast %24 : f32 to vector<1x256xf32>
    %704 = arith.mulf %621, %703 : vector<1x256xf32>
    %705 = vector.broadcast %25 : f32 to vector<1x256xf32>
    %706 = arith.mulf %622, %705 : vector<1x256xf32>
    %707 = arith.addf %704, %706 : vector<1x256xf32>
    %708 = vector.broadcast %26 : f32 to vector<1x256xf32>
    %709 = arith.mulf %623, %708 : vector<1x256xf32>
    %710 = arith.addf %707, %709 : vector<1x256xf32>
    %711 = vector.broadcast %27 : f32 to vector<1x256xf32>
    %712 = arith.mulf %624, %711 : vector<1x256xf32>
    %713 = arith.addf %710, %712 : vector<1x256xf32>
    %714 = vector.broadcast %38 : f32 to vector<1x256xf32>
    %715 = arith.addf %713, %714 : vector<1x256xf32>
    %716 = vector.broadcast %28 : f32 to vector<1x256xf32>
    %717 = arith.mulf %621, %716 : vector<1x256xf32>
    %718 = vector.broadcast %29 : f32 to vector<1x256xf32>
    %719 = arith.mulf %622, %718 : vector<1x256xf32>
    %720 = arith.addf %717, %719 : vector<1x256xf32>
    %721 = vector.broadcast %30 : f32 to vector<1x256xf32>
    %722 = arith.mulf %623, %721 : vector<1x256xf32>
    %723 = arith.addf %720, %722 : vector<1x256xf32>
    %724 = vector.broadcast %31 : f32 to vector<1x256xf32>
    %725 = arith.mulf %624, %724 : vector<1x256xf32>
    %726 = arith.addf %723, %725 : vector<1x256xf32>
    %727 = vector.broadcast %39 : f32 to vector<1x256xf32>
    %728 = arith.addf %726, %727 : vector<1x256xf32>
    %729 = arith.maximumf %637, %650 : vector<1x256xf32>
    %730 = arith.maximumf %729, %663 : vector<1x256xf32>
    %731 = arith.maximumf %730, %676 : vector<1x256xf32>
    %732 = arith.maximumf %731, %689 : vector<1x256xf32>
    %733 = arith.maximumf %732, %702 : vector<1x256xf32>
    %734 = arith.maximumf %733, %715 : vector<1x256xf32>
    %735 = arith.maximumf %734, %728 : vector<1x256xf32>
    %736 = arith.subf %637, %735 : vector<1x256xf32>
    %737 = arith.subf %650, %735 : vector<1x256xf32>
    %738 = arith.subf %663, %735 : vector<1x256xf32>
    %739 = arith.subf %676, %735 : vector<1x256xf32>
    %740 = arith.subf %689, %735 : vector<1x256xf32>
    %741 = arith.subf %702, %735 : vector<1x256xf32>
    %742 = arith.subf %715, %735 : vector<1x256xf32>
    %743 = arith.subf %728, %735 : vector<1x256xf32>
    %744 = math.exp %736 : vector<1x256xf32>
    %745 = math.exp %737 : vector<1x256xf32>
    %746 = math.exp %738 : vector<1x256xf32>
    %747 = math.exp %739 : vector<1x256xf32>
    %748 = math.exp %740 : vector<1x256xf32>
    %749 = math.exp %741 : vector<1x256xf32>
    %750 = math.exp %742 : vector<1x256xf32>
    %751 = math.exp %743 : vector<1x256xf32>
    %752 = arith.addf %744, %745 : vector<1x256xf32>
    %753 = arith.addf %752, %746 : vector<1x256xf32>
    %754 = arith.addf %753, %747 : vector<1x256xf32>
    %755 = arith.addf %754, %748 : vector<1x256xf32>
    %756 = arith.addf %755, %749 : vector<1x256xf32>
    %757 = arith.addf %756, %750 : vector<1x256xf32>
    %758 = arith.addf %757, %751 : vector<1x256xf32>
    %759 = math.log %758 : vector<1x256xf32>
    %760 = arith.subf %736, %759 : vector<1x256xf32>
    %761 = arith.subf %195, %760 : vector<1x256xf32>
    %762 = arith.mulf %187, %761 : vector<1x256xf32>
    %763 = arith.subf %737, %759 : vector<1x256xf32>
    %764 = arith.subf %196, %763 : vector<1x256xf32>
    %765 = arith.mulf %188, %764 : vector<1x256xf32>
    %766 = arith.addf %762, %765 : vector<1x256xf32>
    %767 = arith.subf %738, %759 : vector<1x256xf32>
    %768 = arith.subf %197, %767 : vector<1x256xf32>
    %769 = arith.mulf %189, %768 : vector<1x256xf32>
    %770 = arith.addf %766, %769 : vector<1x256xf32>
    %771 = arith.subf %739, %759 : vector<1x256xf32>
    %772 = arith.subf %198, %771 : vector<1x256xf32>
    %773 = arith.mulf %190, %772 : vector<1x256xf32>
    %774 = arith.addf %770, %773 : vector<1x256xf32>
    %775 = arith.subf %740, %759 : vector<1x256xf32>
    %776 = arith.subf %199, %775 : vector<1x256xf32>
    %777 = arith.mulf %191, %776 : vector<1x256xf32>
    %778 = arith.addf %774, %777 : vector<1x256xf32>
    %779 = arith.subf %741, %759 : vector<1x256xf32>
    %780 = arith.subf %200, %779 : vector<1x256xf32>
    %781 = arith.mulf %192, %780 : vector<1x256xf32>
    %782 = arith.addf %778, %781 : vector<1x256xf32>
    %783 = arith.subf %742, %759 : vector<1x256xf32>
    %784 = arith.subf %201, %783 : vector<1x256xf32>
    %785 = arith.mulf %193, %784 : vector<1x256xf32>
    %786 = arith.addf %782, %785 : vector<1x256xf32>
    %787 = arith.subf %743, %759 : vector<1x256xf32>
    %788 = arith.subf %202, %787 : vector<1x256xf32>
    %789 = arith.mulf %194, %788 : vector<1x256xf32>
    %790 = arith.addf %786, %789 : vector<1x256xf32>
    %791 = vector.shape_cast %790 : vector<1x256xf32> to vector<1x1x256xf32>
    %cst_60 = arith.constant dense<0.000000e+00> : vector<1xf32>
    %792 = vector.multi_reduction <add>, %791, %cst_60 [1, 2] : vector<1x1x256xf32> to vector<1xf32>
    %793 = vector.shape_cast %792 : vector<1xf32> to vector<1x1x1xf32>
    %794 = vector.extract %793[0, 0, 0] : f32 from vector<1x1x1xf32>
    %795 = vector.broadcast %794 : f32 to vector<1x1x128xf32>
    %c0_61 = arith.constant 0 : index
    %c0_62 = arith.constant 0 : index
    %c0_63 = arith.constant 0 : index
    %796 = vector.load %arg5[%c0_61, %c0_62, %c0_63] : memref<1x1x128xf32, #tpu.memory_space<vmem>>, vector<1x1x128xf32>
    tpu.vector_store %arg5[%c0_61, %c0_62, %c0_63], %795 {strides = array<i32>} : memref<1x1x128xf32, #tpu.memory_space<vmem>>, vector<1x1x128xf32>,
    %c0_64 = arith.constant 0 : index
    %c0_65 = arith.constant 0 : index
    %c0_66 = arith.constant 0 : index
    %797 = vector.load %arg6[%c0_64, %c0_65, %c0_66] : memref<1x4x256xf32, #tpu.memory_space<vmem>>, vector<1x1x256xf32>
    %798 = vector.shape_cast %797 : vector<1x1x256xf32> to vector<1x256xf32>
    %799 = vector.shape_cast %621 : vector<1x256xf32> to vector<1x1x256xf32>
    tpu.vector_store %arg6[%c0_64, %c0_65, %c0_66], %799 {strides = array<i32>} : memref<1x4x256xf32, #tpu.memory_space<vmem>>, vector<1x1x256xf32>,
    %c0_67 = arith.constant 0 : index
    %c0_68 = arith.constant 0 : index
    %c0_69 = arith.constant 0 : index
    %800 = vector.load %arg7[%c0_67, %c0_68, %c0_69] : memref<1x4x256xf32, #tpu.memory_space<vmem>>, vector<1x1x256xf32>
    %801 = vector.shape_cast %800 : vector<1x1x256xf32> to vector<1x256xf32>
    %802 = vector.shape_cast %614 : vector<1x256xf32> to vector<1x1x256xf32>
    tpu.vector_store %arg7[%c0_67, %c0_68, %c0_69], %802 {strides = array<i32>} : memref<1x4x256xf32, #tpu.memory_space<vmem>>, vector<1x1x256xf32>,
    %c0_70 = arith.constant 0 : index
    %c1_71 = arith.constant 1 : index
    %c0_72 = arith.constant 0 : index
    %803 = vector.load %arg6[%c0_70, %c1_71, %c0_72] : memref<1x4x256xf32, #tpu.memory_space<vmem>>, vector<1x1x256xf32>
    %804 = vector.shape_cast %803 : vector<1x1x256xf32> to vector<1x256xf32>
    %805 = vector.shape_cast %622 : vector<1x256xf32> to vector<1x1x256xf32>
    tpu.vector_store %arg6[%c0_70, %c1_71, %c0_72], %805 {strides = array<i32>} : memref<1x4x256xf32, #tpu.memory_space<vmem>>, vector<1x1x256xf32>,
    %c0_73 = arith.constant 0 : index
    %c1_74 = arith.constant 1 : index
    %c0_75 = arith.constant 0 : index
    %806 = vector.load %arg7[%c0_73, %c1_74, %c0_75] : memref<1x4x256xf32, #tpu.memory_space<vmem>>, vector<1x1x256xf32>
    %807 = vector.shape_cast %806 : vector<1x1x256xf32> to vector<1x256xf32>
    %808 = vector.shape_cast %616 : vector<1x256xf32> to vector<1x1x256xf32>
    tpu.vector_store %arg7[%c0_73, %c1_74, %c0_75], %808 {strides = array<i32>} : memref<1x4x256xf32, #tpu.memory_space<vmem>>, vector<1x1x256xf32>,
    %c0_76 = arith.constant 0 : index
    %c2_77 = arith.constant 2 : index
    %c0_78 = arith.constant 0 : index
    %809 = vector.load %arg6[%c0_76, %c2_77, %c0_78] : memref<1x4x256xf32, #tpu.memory_space<vmem>>, vector<1x1x256xf32>
    %810 = vector.shape_cast %809 : vector<1x1x256xf32> to vector<1x256xf32>
    %811 = vector.shape_cast %623 : vector<1x256xf32> to vector<1x1x256xf32>
    tpu.vector_store %arg6[%c0_76, %c2_77, %c0_78], %811 {strides = array<i32>} : memref<1x4x256xf32, #tpu.memory_space<vmem>>, vector<1x1x256xf32>,
    %c0_79 = arith.constant 0 : index
    %c2_80 = arith.constant 2 : index
    %c0_81 = arith.constant 0 : index
    %812 = vector.load %arg7[%c0_79, %c2_80, %c0_81] : memref<1x4x256xf32, #tpu.memory_space<vmem>>, vector<1x1x256xf32>
    %813 = vector.shape_cast %812 : vector<1x1x256xf32> to vector<1x256xf32>
    %814 = vector.shape_cast %618 : vector<1x256xf32> to vector<1x1x256xf32>
    tpu.vector_store %arg7[%c0_79, %c2_80, %c0_81], %814 {strides = array<i32>} : memref<1x4x256xf32, #tpu.memory_space<vmem>>, vector<1x1x256xf32>,
    %c0_82 = arith.constant 0 : index
    %c3_83 = arith.constant 3 : index
    %c0_84 = arith.constant 0 : index
    %815 = vector.load %arg6[%c0_82, %c3_83, %c0_84] : memref<1x4x256xf32, #tpu.memory_space<vmem>>, vector<1x1x256xf32>
    %816 = vector.shape_cast %815 : vector<1x1x256xf32> to vector<1x256xf32>
    %817 = vector.shape_cast %624 : vector<1x256xf32> to vector<1x1x256xf32>
    tpu.vector_store %arg6[%c0_82, %c3_83, %c0_84], %817 {strides = array<i32>} : memref<1x4x256xf32, #tpu.memory_space<vmem>>, vector<1x1x256xf32>,
    %c0_85 = arith.constant 0 : index
    %c3_86 = arith.constant 3 : index
    %c0_87 = arith.constant 0 : index
    %818 = vector.load %arg7[%c0_85, %c3_86, %c0_87] : memref<1x4x256xf32, #tpu.memory_space<vmem>>, vector<1x1x256xf32>
    %819 = vector.shape_cast %818 : vector<1x1x256xf32> to vector<1x256xf32>
    %820 = vector.shape_cast %620 : vector<1x256xf32> to vector<1x1x256xf32>
    tpu.vector_store %arg7[%c0_85, %c3_86, %c0_87], %820 {strides = array<i32>} : memref<1x4x256xf32, #tpu.memory_space<vmem>>, vector<1x1x256xf32>,
    return
  }
  func.func @transform_0(%arg0: i32) -> (i32, i32, i32) {
    %c0_i32 = arith.constant 0 : i32
    %c0_i32_0 = arith.constant 0 : i32
    %c0_i32_1 = arith.constant 0 : i32
    return %arg0, %c0_i32, %c0_i32_0 : i32, i32, i32
  }
  func.func @transform_1(%arg0: i32) -> (i32, i32, i32) {
    %c0_i32 = arith.constant 0 : i32
    %c0_i32_0 = arith.constant 0 : i32
    %c0_i32_1 = arith.constant 0 : i32
    return %arg0, %c0_i32, %c0_i32_0 : i32, i32, i32
  }
  func.func @transform_2(%arg0: i32) -> i32 {
    %c0_i32 = arith.constant 0 : i32
    %c0_i32_0 = arith.constant 0 : i32
    return %c0_i32 : i32
  }
  func.func @transform_3(%arg0: i32) -> i32 {
    %c0_i32 = arith.constant 0 : i32
    %c0_i32_0 = arith.constant 0 : i32
    return %c0_i32 : i32
  }
  func.func @transform_4(%arg0: i32) -> (i32, i32, i32) {
    %c0_i32 = arith.constant 0 : i32
    %c0_i32_0 = arith.constant 0 : i32
    %c0_i32_1 = arith.constant 0 : i32
    return %arg0, %c0_i32, %c0_i32_0 : i32, i32, i32
  }
  func.func @transform_5(%arg0: i32) -> (i32, i32, i32) {
    %c0_i32 = arith.constant 0 : i32
    %c0_i32_0 = arith.constant 0 : i32
    %c0_i32_1 = arith.constant 0 : i32
    return %arg0, %c0_i32, %c0_i32_0 : i32, i32, i32
  }
  func.func @transform_6(%arg0: i32) -> (i32, i32, i32) {
    %c0_i32 = arith.constant 0 : i32
    %c0_i32_0 = arith.constant 0 : i32
    %c0_i32_1 = arith.constant 0 : i32
    return %arg0, %c0_i32, %c0_i32_0 : i32, i32, i32
  }
}

</mosaic_0001>

<llo_original>
// kernel: vat_loss.1
$region0: #{vat_loss.1}
  #allocation0 [shape = 'u32[]', space=smem, size = 0x4, offset = 0x4, fixed_abs, tag = 'smem constant byte address 0x4 - core index']
  #allocation1 [shape = 'u32[144,128]{1,0:T(1,128)}', space=vmem, size = 0x12000, scoped, tag = 'internal scratch']
  %s0 = inlined_call_operand.vmem [shape: f32[2,4,256], index: 0, kind: input, shape index: {}]
  %s1 = inlined_call_operand.vmem [shape: f32[2,4,256], index: 1, kind: input, shape index: {}]
  %s2 = inlined_call_operand.vmem [shape: f32[32], index: 2, kind: input, shape index: {}]
  %s3 = inlined_call_operand.vmem [shape: f32[8], index: 3, kind: input, shape index: {}]
  %s4 = inlined_call_operand.vmem [shape: f32[2,1,128], index: 4, kind: output, shape index: {0}]
  %s5 = inlined_call_operand.vmem [shape: f32[2,4,256], index: 5, kind: output, shape index: {1}]
  %s6 = inlined_call_operand.vmem [shape: f32[2,4,256], index: 6, kind: output, shape index: {2}]
  %7 = xla_tuple %s4, %s5, %s6
  %s8 = sld [smem:[#allocation0]]
  $region73: #{vat_loss.1} parent=0
    _
  %s10 = ssub.s32 1, %s8
  %s11 = scalar_select 0, %s10, %s8
  $region1: #{vat_loss.1} parent=0
    #allocation2 [shape = 'u8[512]{0}', space=smem, size = 0x200, scoped, tag = 'input window, operand 2, single buffered']
    #allocation3 [shape = 's32[2]{0}', space=sflag, size = 0x8, scoped, tag = 'scoped memory for vat_loss.1']
    #allocation4 [shape = 'u8[512]{0}', space=smem, size = 0x200, scoped, tag = 'input window, operand 3, single buffered']
    #allocation5 [shape = 's32[1]{0}', space=sflag, size = 0x4, scoped, tag = 'scoped memory for vat_loss.1']
    %12 = vsyncpa [#allocation3], 0
    %13 = vsyncpa [#allocation5], 0
    loop: start=0, step=1, limit=4
    $region2: #{vat_loss.1} parent=1 // loop_pre_header
      _
    $region3: #{vat_loss.1} parent=1 // loop_header
      %s15 = sphi 0, %s19
      %p16 = scmp.ge.s32.totalorder %s15, 4
      %s25 = sphi 0, %s27
      %s28 = sphi 0, %s25
      %s29 = sphi 0, %s28
      %s45 = sphi 0, %s29
      %s51 = sphi 0, %s53
      %s54 = sphi 0, %s51
      %s55 = sphi 0, %s54
      %s71 = sphi 0, %s55
      %s75 = sphi 0, %s75
      %s77 = sphi 0, %s75
      %s78 = sphi 0, %s77
      %s92 = sphi 0, %s78
      %s96 = sphi 0, %s96
      %s98 = sphi 0, %s96
      %s99 = sphi 0, %s98
      %s113 = sphi 0, %s99
      %s119 = sphi 0, %s121
      %s122 = sphi 0, %s119
      %s123 = sphi 0, %s122
      %s139 = sphi 0, %s123
      %s145 = sphi 0, %s147
      %s148 = sphi 0, %s145
      %s149 = sphi 0, %s148
      %s165 = sphi 0, %s149
      %s171 = sphi 0, %s173
      %s174 = sphi 0, %s171
      %s175 = sphi 0, %s174
      %s191 = sphi 0, %s175
    $region4: #{vat_loss.1} parent=1 // loop_header_branch
      %18 = sbr.rel (%p16) target = $region8
    $region5: #{vat_loss.1} parent=1 // loop_body
      %s20 = ssub.s32 %s15, 1
      %s21 = ssub.s32 %s15, 2
      %s22 = sadd.s32 %s15, 1
      %s23 = ssub.s32 %s15, %s22
      %p24 = scmp.eq.s32.totalorder %s23, 0
      %s26 = sadd.s32 %s25, 1
      %s27 = scalar_select %p24, %s25, %s26
      %p30 = pneg %p24
      %p31 = scmp.eq.s32.totalorder %s15, 1
      %p32 = por %p30, %p31
      %p33 = scmp.ne.s32.totalorder %s25, %s28
      %p34 = scmp.eq.s32.totalorder %s15, 0
      %p35 = por %p33, %p34
      %p36 = scmp.ne.s32.totalorder %s25, %s28
      %p37 = scmp.eq.s32.totalorder %s20, 1
      %p38 = por %p36, %p37
      %p39 = scmp.ne.s32.totalorder %s28, %s29
      %p40 = scmp.eq.s32.totalorder %s20, 0
      %p41 = por %p39, %p40
      %p42 = scmp.ne.s32.totalorder %s28, %s29
      %p43 = scmp.eq.s32.totalorder %s21, 1
      %p44 = por %p42, %p43
      %p46 = scmp.ne.s32.totalorder %s29, %s45
      %p47 = scmp.eq.s32.totalorder %s21, 0
      %p48 = por %p46, %p47
      %s49 = ssub.s32 %s15, %s22
      %p50 = scmp.eq.s32.totalorder %s49, 0
      %s52 = sadd.s32 %s51, 1
      %s53 = scalar_select %p50, %s51, %s52
      %p56 = pneg %p50
      %p57 = scmp.eq.s32.totalorder %s15, 1
      %p58 = por %p56, %p57
      %p59 = scmp.ne.s32.totalorder %s51, %s54
      %p60 = scmp.eq.s32.totalorder %s15, 0
      %p61 = por %p59, %p60
      %p62 = scmp.ne.s32.totalorder %s51, %s54
      %p63 = scmp.eq.s32.totalorder %s20, 1
      %p64 = por %p62, %p63
      %p65 = scmp.ne.s32.totalorder %s54, %s55
      %p66 = scmp.eq.s32.totalorder %s20, 0
      %p67 = por %p65, %p66
      %p68 = scmp.ne.s32.totalorder %s54, %s55
      %p69 = scmp.eq.s32.totalorder %s21, 1
      %p70 = por %p68, %p69
      %p72 = scmp.ne.s32.totalorder %s55, %s71
      %p73 = scmp.eq.s32.totalorder %s21, 0
      %p74 = por %p72, %p73
      %s76 = sadd.s32 %s75, 1
      %p79 = scmp.eq.s32.totalorder %s15, 1
      %p80 = scmp.ne.s32.totalorder %s75, %s77
      %p81 = scmp.eq.s32.totalorder %s15, 0
      %p82 = por %p80, %p81
      %p83 = scmp.ne.s32.totalorder %s75, %s77
      %p84 = scmp.eq.s32.totalorder %s20, 1
      %p85 = por %p83, %p84
      %p86 = scmp.ne.s32.totalorder %s77, %s78
      %p87 = scmp.eq.s32.totalorder %s20, 0
      %p88 = por %p86, %p87
      %p89 = scmp.ne.s32.totalorder %s77, %s78
      %p90 = scmp.eq.s32.totalorder %s21, 1
      %p91 = por %p89, %p90
      %p93 = scmp.ne.s32.totalorder %s78, %s92
      %p94 = scmp.eq.s32.totalorder %s21, 0
      %p95 = por %p93, %p94
      %s97 = sadd.s32 %s96, 1
      %p100 = scmp.eq.s32.totalorder %s15, 1
      %p101 = scmp.ne.s32.totalorder %s96, %s98
      %p102 = scmp.eq.s32.totalorder %s15, 0
      %p103 = por %p101, %p102
      %p104 = scmp.ne.s32.totalorder %s96, %s98
      %p105 = scmp.eq.s32.totalorder %s20, 1
      %p106 = por %p104, %p105
      %p107 = scmp.ne.s32.totalorder %s98, %s99
      %p108 = scmp.eq.s32.totalorder %s20, 0
      %p109 = por %p107, %p108
      %p110 = scmp.ne.s32.totalorder %s98, %s99
      %p111 = scmp.eq.s32.totalorder %s21, 1
      %p112 = por %p110, %p111
      %p114 = scmp.ne.s32.totalorder %s99, %s113
      %p115 = scmp.eq.s32.totalorder %s21, 0
      %p116 = por %p114, %p115
      %s117 = ssub.s32 %s15, %s22
      %p118 = scmp.eq.s32.totalorder %s117, 0
      %s120 = sadd.s32 %s119, 1
      %s121 = scalar_select %p118, %s119, %s120
      %p124 = pneg %p118
      %p125 = scmp.eq.s32.totalorder %s15, 1
      %p126 = por %p124, %p125
      %p127 = scmp.ne.s32.totalorder %s119, %s122
      %p128 = scmp.eq.s32.totalorder %s15, 0
      %p129 = por %p127, %p128
      %p130 = scmp.ne.s32.totalorder %s119, %s122
      %p131 = scmp.eq.s32.totalorder %s20, 1
      %p132 = por %p130, %p131
      %p133 = scmp.ne.s32.totalorder %s122, %s123
      %p134 = scmp.eq.s32.totalorder %s20, 0
      %p135 = por %p133, %p134
      %p136 = scmp.ne.s32.totalorder %s122, %s123
      %p137 = scmp.eq.s32.totalorder %s21, 1
      %p138 = por %p136, %p137
      %p140 = scmp.ne.s32.totalorder %s123, %s139
      %p141 = scmp.eq.s32.totalorder %s21, 0
      %p142 = por %p140, %p141
      %s143 = ssub.s32 %s15, %s22
      %p144 = scmp.eq.s32.totalorder %s143, 0
      %s146 = sadd.s32 %s145, 1
      %s147 = scalar_select %p144, %s145, %s146
      %p150 = pneg %p144
      %p151 = scmp.eq.s32.totalorder %s15, 1
      %p152 = por %p150, %p151
      %p153 = scmp.ne.s32.totalorder %s145, %s148
      %p154 = scmp.eq.s32.totalorder %s15, 0
      %p155 = por %p153, %p154
      %p156 = scmp.ne.s32.totalorder %s145, %s148
      %p157 = scmp.eq.s32.totalorder %s20, 1
      %p158 = por %p156, %p157
      %p159 = scmp.ne.s32.totalorder %s148, %s149
      %p160 = scmp.eq.s32.totalorder %s20, 0
      %p161 = por %p159, %p160
      %p162 = scmp.ne.s32.totalorder %s148, %s149
      %p163 = scmp.eq.s32.totalorder %s21, 1
      %p164 = por %p162, %p163
      %p166 = scmp.ne.s32.totalorder %s149, %s165
      %p167 = scmp.eq.s32.totalorder %s21, 0
      %p168 = por %p166, %p167
      %s169 = ssub.s32 %s15, %s22
      %p170 = scmp.eq.s32.totalorder %s169, 0
      %s172 = sadd.s32 %s171, 1
      %s173 = scalar_select %p170, %s171, %s172
      %p176 = pneg %p170
      %p177 = scmp.eq.s32.totalorder %s15, 1
      %p178 = por %p176, %p177
      %p179 = scmp.ne.s32.totalorder %s171, %s174
      %p180 = scmp.eq.s32.totalorder %s15, 0
      %p181 = por %p179, %p180
      %p182 = scmp.ne.s32.totalorder %s171, %s174
      %p183 = scmp.eq.s32.totalorder %s20, 1
      %p184 = por %p182, %p183
      %p185 = scmp.ne.s32.totalorder %s174, %s175
      %p186 = scmp.eq.s32.totalorder %s20, 0
      %p187 = por %p185, %p186
      %p188 = scmp.ne.s32.totalorder %s174, %s175
      %p189 = scmp.eq.s32.totalorder %s21, 1
      %p190 = por %p188, %p189
      %p192 = scmp.ne.s32.totalorder %s175, %s191
      %p193 = scmp.eq.s32.totalorder %s21, 0
      %p194 = por %p192, %p193
      %p195 = scmp.le.s32.totalorder 1, %s15
      %p196 = scmp.lt.s32.totalorder %s15, 3
      %p197 = pnand %p195, %p196
      %p198 = pneg %p197
      // Predicated region
      $region9: #{vat_loss.1} parent=5 // pred_check
        _
      $region10: #{vat_loss.1} parent=5 // pred_check_branch
        %200 = sbr.rel (%p197) target = $region12
      $region11: #{vat_loss.1} parent=5 // pred_region
        %s201 = ssub.s32 %s15, 1
        // Predicated region
        $region13: #{vat_loss.1} parent=11 // pred_check
          %p202 = pneg %p88
        $region14: #{vat_loss.1} parent=11 // pred_check_branch
          %204 = sbr.rel (%p202) target = $region16
        $region15: #{vat_loss.1} parent=11 // pred_region
          %s206 = ssub.s32 16, 16
          %207 = vsyncadd [#allocation3], %s206
          %s209 = sshll.u32 %s2, 4
          %s210 = int_to_ptr.vmem [resolvable:$true] %s209
          %212 = dma.vmem_to_smem %s210, 16, [#allocation2], [#allocation3]
        $region16: #{vat_loss.1} parent=11 // pred_fallthru
          _
        // Predicated region
        $region17: #{vat_loss.1} parent=11 // pred_check
          %p213 = pneg %p109
        $region18: #{vat_loss.1} parent=11 // pred_check_branch
          %215 = sbr.rel (%p213) target = $region20
        $region19: #{vat_loss.1} parent=11 // pred_region
          %s217 = ssub.s32 16, 16
          %218 = vsyncadd [#allocation5], %s217
          %s220 = sshll.u32 %s3, 4
          %s221 = int_to_ptr.vmem [resolvable:$true] %s220
          %223 = dma.vmem_to_smem %s221, 16, [#allocation4], [#allocation5]
        $region20: #{vat_loss.1} parent=11 // pred_fallthru
          _
      $region12: #{vat_loss.1} parent=5 // pred_fallthru
        _
      %p224 = scmp.lt.s32.totalorder %s15, 2
      // Predicated region
      $region21: #{vat_loss.1} parent=5 // pred_check
        %p225 = pneg %p224
      $region22: #{vat_loss.1} parent=5 // pred_check_branch
        %227 = sbr.rel (%p225) target = $region24
      $region23: #{vat_loss.1} parent=5 // pred_region
        // Predicated region
        $region25: #{vat_loss.1} parent=23 // pred_check
          %p228 = pneg %p35
        $region26: #{vat_loss.1} parent=23 // pred_check_branch
          %230 = sbr.rel (%p228) target = $region28
        $region27: #{vat_loss.1} parent=23 // pred_region
          %p231 = scmp.lt.s32.totalorder %s15, 1
          %s232 = scalar_select %p231, %s15, 1
          %s233 = smul.addr %s232, 2
          %s234 = smul.addr %s233, 4
          %s235 = scalar_lea.vmem %s0, %s234
        $region28: #{vat_loss.1} parent=23 // pred_fallthru
          _
        // Predicated region
        $region29: #{vat_loss.1} parent=23 // pred_check
          %p236 = pneg %p61
        $region30: #{vat_loss.1} parent=23 // pred_check_branch
          %238 = sbr.rel (%p236) target = $region32
        $region31: #{vat_loss.1} parent=23 // pred_region
          %p239 = scmp.lt.s32.totalorder %s15, 1
          %s240 = scalar_select %p239, %s15, 1
          %s241 = smul.addr %s240, 2
          %s242 = smul.addr %s241, 4
          %s243 = scalar_lea.vmem %s1, %s242
        $region32: #{vat_loss.1} parent=23 // pred_fallthru
          _
      $region24: #{vat_loss.1} parent=5 // pred_fallthru
        _
      %p244 = scmp.le.s32.totalorder 1, %s15
      %p245 = scmp.lt.s32.totalorder %s15, 3
      %p246 = pnand %p244, %p245
      %p247 = pneg %p246
      // Predicated region
      $region33: #{vat_loss.1} parent=5 // pred_check
        _
      $region34: #{vat_loss.1} parent=5 // pred_check_branch
        %249 = sbr.rel (%p246) target = $region36
      $region35: #{vat_loss.1} parent=5 // pred_region
        %s250 = ssub.s32 %s15, 1
        // Predicated region
        $region37: #{vat_loss.1} parent=35 // pred_check
          %p251 = pneg %p88
        $region38: #{vat_loss.1} parent=35 // pred_check_branch
          %253 = sbr.rel (%p251) target = $region40
        $region39: #{vat_loss.1} parent=35 // pred_region
          %254 = dma.done [#allocation3], 16
        $region40: #{vat_loss.1} parent=35 // pred_fallthru
          _
        // Predicated region
        $region41: #{vat_loss.1} parent=35 // pred_check
          %p255 = pneg %p109
        $region42: #{vat_loss.1} parent=35 // pred_check_branch
          %257 = sbr.rel (%p255) target = $region44
        $region43: #{vat_loss.1} parent=35 // pred_region
          %258 = dma.done [#allocation5], 16
        $region44: #{vat_loss.1} parent=35 // pred_fallthru
          _
        %259 = sfence
        %p260 = scmp.lt.s32.totalorder %s20, 1
        %s261 = scalar_select %p260, %s20, 1
        %s262 = smul.addr %s261, 2
        %s263 = smul.addr %s262, 4
        %s264 = scalar_lea.vmem %s0, %s263
        %p265 = pneg %p41
        %p266 = pneg %p38
        %p267 = scmp.lt.s32.totalorder %s20, 1
        %s268 = scalar_select %p267, %s20, 1
        %s269 = smul.addr %s268, 2
        %s270 = smul.addr %s269, 4
        %s271 = scalar_lea.vmem %s1, %s270
        %p272 = pneg %p67
        %p273 = pneg %p64
        %p274 = pneg %p88
        %p275 = pneg %p85
        %p276 = pneg %p109
        %p277 = pneg %p106
        %p278 = pneg %p135
        %p279 = pneg %p132
        %p280 = scmp.lt.s32.totalorder %s20, 1
        %s281 = scalar_select %p280, %s20, 1
        %s282 = scalar_lea.vmem %s4, %s281
        %p283 = pneg %p161
        %p284 = pneg %p158
        %p285 = scmp.lt.s32.totalorder %s20, 1
        %s286 = scalar_select %p285, %s20, 1
        %s287 = smul.addr %s286, 2
        %s288 = smul.addr %s287, 4
        %s289 = scalar_lea.vmem %s5, %s288
        %p290 = pneg %p187
        %p291 = pneg %p184
        %p292 = scmp.lt.s32.totalorder %s20, 1
        %s293 = scalar_select %p292, %s20, 1
        %s294 = smul.addr %s293, 2
        %s295 = smul.addr %s294, 4
        %s296 = scalar_lea.vmem %s6, %s295
        %p297 = scmp.lt.s32.totalorder %s20, 1
        %s298 = scalar_select %p297, %s20, 1
        %s299 = smul.addr %s298, 2
        %s300 = smul.addr %s299, 4
        %s301 = scalar_lea.vmem %s0, %s300
        %p302 = scmp.lt.s32.totalorder %s20, 1
        %s303 = scalar_select %p302, %s20, 1
        %s304 = smul.addr %s303, 2
        %s305 = smul.addr %s304, 4
        %s306 = scalar_lea.vmem %s1, %s305
        %p307 = scmp.lt.s32.totalorder %s20, 1
        %s308 = scalar_select %p307, %s20, 1
        %s309 = scalar_lea.vmem %s4, %s308
        %p310 = scmp.lt.s32.totalorder %s20, 1
        %s311 = scalar_select %p310, %s20, 1
        %s312 = smul.addr %s311, 2
        %s313 = smul.addr %s312, 4
        %s314 = scalar_lea.vmem %s5, %s313
        %p315 = scmp.lt.s32.totalorder %s20, 1
        %s316 = scalar_select %p315, %s20, 1
        %s317 = smul.addr %s316, 2
        %s318 = smul.addr %s317, 4
        %s319 = scalar_lea.vmem %s6, %s318
        %s320 = sld [smem:[#allocation2]]
        %s321 = sld [smem:[#allocation2 + $0x1]]
        %s322 = sld [smem:[#allocation2 + $0x2]]
        %s323 = sld [smem:[#allocation2 + $0x3]]
        %s324 = sld [smem:[#allocation2 + $0x4]]
        %s325 = sld [smem:[#allocation2 + $0x5]]
        %s326 = sld [smem:[#allocation2 + $0x6]]
        %s327 = sld [smem:[#allocation2 + $0x7]]
        %s328 = sld [smem:[#allocation2 + $0x8]]
        %s329 = sld [smem:[#allocation2 + $0x9]]
        %s330 = sld [smem:[#allocation2 + $0xa]]
        %s331 = sld [smem:[#allocation2 + $0xb]]
        %s332 = sld [smem:[#allocation2 + $0xc]]
        %s333 = sld [smem:[#allocation2 + $0xd]]
        %s334 = sld [smem:[#allocation2 + $0xe]]
        %s335 = sld [smem:[#allocation2 + $0xf]]
        %s336 = sld [smem:[#allocation2 + $0x10]]
        %s337 = sld [smem:[#allocation2 + $0x11]]
        %s338 = sld [smem:[#allocation2 + $0x12]]
        %s339 = sld [smem:[#allocation2 + $0x13]]
        %s340 = sld [smem:[#allocation2 + $0x14]]
        %s341 = sld [smem:[#allocation2 + $0x15]]
        %s342 = sld [smem:[#allocation2 + $0x16]]
        %s343 = sld [smem:[#allocation2 + $0x17]]
        %s344 = sld [smem:[#allocation2 + $0x18]]
        %s345 = sld [smem:[#allocation2 + $0x19]]
        %s346 = sld [smem:[#allocation2 + $0x1a]]
        %s347 = sld [smem:[#allocation2 + $0x1b]]
        %s348 = sld [smem:[#allocation2 + $0x1c]]
        %s349 = sld [smem:[#allocation2 + $0x1d]]
        %s350 = sld [smem:[#allocation2 + $0x1e]]
        %s351 = sld [smem:[#allocation2 + $0x1f]]
        %s352 = sld [smem:[#allocation4]]
        %s353 = sld [smem:[#allocation4 + $0x1]]
        %s354 = sld [smem:[#allocation4 + $0x2]]
        %s355 = sld [smem:[#allocation4 + $0x3]]
        %s356 = sld [smem:[#allocation4 + $0x4]]
        %s357 = sld [smem:[#allocation4 + $0x5]]
        %s358 = sld [smem:[#allocation4 + $0x6]]
        %s359 = sld [smem:[#allocation4 + $0x7]]
        %v360 = vld [vmem:[%s301] sm:$0xff]
        %v361 = vld [vmem:[%s306] sm:$0xff]
        %v362 = vstv %s320
        %v363 = vmul.f32 %v360, %v362
        %v364 = vstv %s321
        %v365 = vmul.f32 %v360, %v364
        %v367 = vrot.slane %v365, 5
        %v368 = vrot.slane %v367, 4
        %v370 = vadd.f32 %v363, %v368
        %v371 = vstv %s322
        %v372 = vmul.f32 %v360, %v371
        %v374 = vrot.slane %v372, 6
        %v375 = vrot.slane %v374, 4
        %v377 = vadd.f32 %v370, %v375
        %v378 = vstv %s323
        %v379 = vmul.f32 %v360, %v378
        %v381 = vrot.slane %v379, 7
        %v382 = vrot.slane %v381, 4
        %v384 = vadd.f32 %v377, %v382
        %v385 = vstv %s352
        %v386 = vadd.f32 %v384, %v385
        %v387 = vstv %s324
        %v388 = vmul.f32 %v360, %v387
        %v389 = vstv %s325
        %v390 = vmul.f32 %v360, %v389
        %v392 = vrot.slane %v390, 5
        %v393 = vrot.slane %v392, 4
        %v395 = vadd.f32 %v388, %v393
        %v396 = vstv %s326
        %v397 = vmul.f32 %v360, %v396
        %v399 = vrot.slane %v397, 6
        %v400 = vrot.slane %v399, 4
        %v402 = vadd.f32 %v395, %v400
        %v403 = vstv %s327
        %v404 = vmul.f32 %v360, %v403
        %v406 = vrot.slane %v404, 7
        %v407 = vrot.slane %v406, 4
        %v409 = vadd.f32 %v402, %v407
        %v410 = vstv %s353
        %v411 = vadd.f32 %v409, %v410
        %v412 = vstv %s328
        %v413 = vmul.f32 %v360, %v412
        %v414 = vstv %s329
        %v415 = vmul.f32 %v360, %v414
        %v417 = vrot.slane %v415, 5
        %v418 = vrot.slane %v417, 4
        %v420 = vadd.f32 %v413, %v418
        %v421 = vstv %s330
        %v422 = vmul.f32 %v360, %v421
        %v424 = vrot.slane %v422, 6
        %v425 = vrot.slane %v424, 4
        %v427 = vadd.f32 %v420, %v425
        %v428 = vstv %s331
        %v429 = vmul.f32 %v360, %v428
        %v431 = vrot.slane %v429, 7
        %v432 = vrot.slane %v431, 4
        %v434 = vadd.f32 %v427, %v432
        %v435 = vstv %s354
        %v436 = vadd.f32 %v434, %v435
        %v437 = vstv %s332
        %v438 = vmul.f32 %v360, %v437
        %v439 = vstv %s333
        %v440 = vmul.f32 %v360, %v439
        %v442 = vrot.slane %v440, 5
        %v443 = vrot.slane %v442, 4
        %v445 = vadd.f32 %v438, %v443
        %v446 = vstv %s334
        %v447 = vmul.f32 %v360, %v446
        %v449 = vrot.slane %v447, 6
        %v450 = vrot.slane %v449, 4
        %v452 = vadd.f32 %v445, %v450
        %v453 = vstv %s335
        %v454 = vmul.f32 %v360, %v453
        %v456 = vrot.slane %v454, 7
        %v457 = vrot.slane %v456, 4
        %v459 = vadd.f32 %v452, %v457
        %v460 = vstv %s355
        %v461 = vadd.f32 %v459, %v460
        %v462 = vstv %s336
        %v463 = vmul.f32 %v360, %v462
        %v464 = vstv %s337
        %v465 = vmul.f32 %v360, %v464
        %v467 = vrot.slane %v465, 5
        %v468 = vrot.slane %v467, 4
        %v470 = vadd.f32 %v463, %v468
        %v471 = vstv %s338
        %v472 = vmul.f32 %v360, %v471
        %v474 = vrot.slane %v472, 6
        %v475 = vrot.slane %v474, 4
        %v477 = vadd.f32 %v470, %v475
        %v478 = vstv %s339
        %v479 = vmul.f32 %v360, %v478
        %v481 = vrot.slane %v479, 7
        %v482 = vrot.slane %v481, 4
        %v484 = vadd.f32 %v477, %v482
        %v485 = vstv %s356
        %v486 = vadd.f32 %v484, %v485
        %v487 = vstv %s340
        %v488 = vmul.f32 %v360, %v487
        %v489 = vstv %s341
        %v490 = vmul.f32 %v360, %v489
        %v492 = vrot.slane %v490, 5
        %v493 = vrot.slane %v492, 4
        %v495 = vadd.f32 %v488, %v493
        %v496 = vstv %s342
        %v497 = vmul.f32 %v360, %v496
        %v499 = vrot.slane %v497, 6
        %v500 = vrot.slane %v499, 4
        %v502 = vadd.f32 %v495, %v500
        %v503 = vstv %s343
        %v504 = vmul.f32 %v360, %v503
        %v506 = vrot.slane %v504, 7
        %v507 = vrot.slane %v506, 4
        %v509 = vadd.f32 %v502, %v507
        %v510 = vstv %s357
        %v511 = vadd.f32 %v509, %v510
        %v512 = vstv %s344
        %v513 = vmul.f32 %v360, %v512
        %v514 = vstv %s345
        %v515 = vmul.f32 %v360, %v514
        %v517 = vrot.slane %v515, 5
        %v518 = vrot.slane %v517, 4
        %v520 = vadd.f32 %v513, %v518
        %v521 = vstv %s346
        %v522 = vmul.f32 %v360, %v521
        %v524 = vrot.slane %v522, 6
        %v525 = vrot.slane %v524, 4
        %v527 = vadd.f32 %v520, %v525
        %v528 = vstv %s347
        %v529 = vmul.f32 %v360, %v528
        %v531 = vrot.slane %v529, 7
        %v532 = vrot.slane %v531, 4
        %v534 = vadd.f32 %v527, %v532
        %v535 = vstv %s358
        %v536 = vadd.f32 %v534, %v535
        %v537 = vstv %s348
        %v538 = vmul.f32 %v360, %v537
        %v539 = vstv %s349
        %v540 = vmul.f32 %v360, %v539
        %v542 = vrot.slane %v540, 5
        %v543 = vrot.slane %v542, 4
        %v545 = vadd.f32 %v538, %v543
        %v546 = vstv %s350
        %v547 = vmul.f32 %v360, %v546
        %v549 = vrot.slane %v547, 6
        %v550 = vrot.slane %v549, 4
        %v552 = vadd.f32 %v545, %v550
        %v553 = vstv %s351
        %v554 = vmul.f32 %v360, %v553
        %v556 = vrot.slane %v554, 7
        %v557 = vrot.slane %v556, 4
        %v559 = vadd.f32 %v552, %v557
        %v560 = vstv %s359
        %v561 = vadd.f32 %v559, %v560
        %v562 = vmax.f32 %v386, %v411
        %v563 = vmax.f32 %v562, %v436
        %v564 = vmax.f32 %v563, %v461
        %v565 = vmax.f32 %v564, %v486
        %v566 = vmax.f32 %v565, %v511
        %v567 = vmax.f32 %v566, %v536
        %v568 = vmax.f32 %v567, %v561
        %v569 = vsub.f32 %v386, %v568
        %v570 = vsub.f32 %v411, %v568
        %v571 = vsub.f32 %v436, %v568
        %v572 = vsub.f32 %v461, %v568
        %v573 = vsub.f32 %v486, %v568
        %v574 = vsub.f32 %v511, %v568
        %v575 = vsub.f32 %v536, %v568
        %v576 = vsub.f32 %v561, %v568
        %v577 = vmul.f32 %v569, 1.442695
        %v578 = vpow.pop %v577
        %v579 = vmul.f32 %v570, 1.442695
        %v580 = vpow.pop %v579
        %v581 = vmul.f32 %v571, 1.442695
        %v582 = vpow.pop %v581
        %v583 = vmul.f32 %v572, 1.442695
        %v584 = vpow.pop %v583
        %v585 = vmul.f32 %v573, 1.442695
        %v586 = vpow.pop %v585
        %v587 = vmul.f32 %v574, 1.442695
        %v588 = vpow.pop %v587
        %v589 = vmul.f32 %v575, 1.442695
        %v590 = vpow.pop %v589
        %v591 = vmul.f32 %v576, 1.442695
        %v592 = vpow.pop %v591
        %v593 = vadd.f32 %v578, %v580
        %v594 = vadd.f32 %v593, %v582
        %v595 = vadd.f32 %v594, %v584
        %v596 = vadd.f32 %v595, %v586
        %v597 = vadd.f32 %v596, %v588
        %v598 = vadd.f32 %v597, %v590
        %v599 = vadd.f32 %v598, %v592
        %v600 = vrcp.pop %v599
        %v601 = vmul.f32 1.0, %v600
        %v602 = vlog2.pop %v599
        %v603 = vmul.f32 %v602, 0.6931472
        %v604 = vmul.f32 %v578, %v601
        %v605 = vmul.f32 %v580, %v601
        %v606 = vmul.f32 %v582, %v601
        %v607 = vmul.f32 %v584, %v601
        %v608 = vmul.f32 %v586, %v601
        %v609 = vmul.f32 %v588, %v601
        %v610 = vmul.f32 %v590, %v601
        %v611 = vmul.f32 %v592, %v601
        %v612 = vsub.f32 %v569, %v603
        %v613 = vsub.f32 %v570, %v603
        %v614 = vsub.f32 %v571, %v603
        %v615 = vsub.f32 %v572, %v603
        %v616 = vsub.f32 %v573, %v603
        %v617 = vsub.f32 %v574, %v603
        %v618 = vsub.f32 %v575, %v603
        %v619 = vsub.f32 %v576, %v603
        %v620 = vmul.f32 %v361, %v361
        %v622 = vlaneseq
        %v623 = vshrl.u32 %v622, 7
        %v624 = vsub.s32 0, %v623
        %v625 = vrot.slane %v620, %v624
        %v626 = vlaneseq
        %v627 = vshrl.u32 %v626, 7
        %v628 = vsub.s32 4, %v627
        %v629 = vrot.slane %v620, %v628
        %vm632 = vcmask 1040384
        %v633 = vsel %vm632, %v625, 0.0
        %v634 = vsel %vm632, %v629, 0.0
        %v635 = vadd.f32 %v633, %v634
        %636 = vadd.xlane.f32.xlu0 %v635
        %v637 = vpop.xlane.xlu0 %636
        %v638 = vlaneseq
        %v639 = vshrl.u32 %v638, 7
        %v640 = vsub.s32 1, %v639
        %v641 = vrot.slane %v620, %v640
        %v642 = vlaneseq
        %v643 = vshrl.u32 %v642, 7
        %v644 = vsub.s32 5, %v643
        %v645 = vrot.slane %v620, %v644
        %vm648 = vcmask 1041409
        %v649 = vsel %vm648, %v641, 0.0
        %v650 = vsel %vm648, %v645, 0.0
        %v651 = vadd.f32 %v649, %v650
        %652 = vadd.xlane.f32.xlu0 %v651
        %v653 = vpop.xlane.xlu0 %652
        %v655 = vrot.slane %v653, 1
        %v657 = vadd.f32 %v637, %v655
        %v658 = vlaneseq
        %v659 = vshrl.u32 %v658, 7
        %v660 = vsub.s32 2, %v659
        %v661 = vrot.slane %v620, %v660
        %v662 = vlaneseq
        %v663 = vshrl.u32 %v662, 7
        %v664 = vsub.s32 6, %v663
        %v665 = vrot.slane %v620, %v664
        %vm668 = vcmask 1042434
        %v669 = vsel %vm668, %v661, 0.0
        %v670 = vsel %vm668, %v665, 0.0
        %v671 = vadd.f32 %v669, %v670
        %672 = vadd.xlane.f32.xlu0 %v671
        %v673 = vpop.xlane.xlu0 %672
        %v675 = vrot.slane %v673, 2
        %v677 = vadd.f32 %v657, %v675
        %v678 = vlaneseq
        %v679 = vshrl.u32 %v678, 7
        %v680 = vsub.s32 3, %v679
        %v681 = vrot.slane %v620, %v680
        %v682 = vlaneseq
        %v683 = vshrl.u32 %v682, 7
        %v684 = vsub.s32 7, %v683
        %v685 = vrot.slane %v620, %v684
        %vm688 = vcmask 1043459
        %v689 = vsel %vm688, %v681, 0.0
        %v690 = vsel %vm688, %v685, 0.0
        %v691 = vadd.f32 %v689, %v690
        %692 = vadd.xlane.f32.xlu0 %v691
        %v693 = vpop.xlane.xlu0 %692
        %v695 = vrot.slane %v693, 3
        %v697 = vadd.f32 %v677, %v695
        %v698 = vadd.f32 %v697, 1e-12
        %v699 = vrsqrt.pop %v698
        %701 = vset.pattern.permute.xlu0 0
        %702 = vperm.xlu0 %701, %v699
        %v703 = vpop.permute.xlu0 %702
        %v705 = vunpack.c.l.s4 839922192
        %v706 = vunpack.c.0.s8 %v705
        %v707 = vlaneseq
        %v708 = vshrl.u32 %v707, 7
        %v709 = vsub.s32 %v706, %v708
        %v710 = vrot.slane %v703, %v709
        %v712 = vmul.f32 %v361, %v710
        %v713 = vrot.slane %v710, 7
        %v715 = vmul.f32 %v361, %v713
        %v716 = vrot.slane %v710, 6
        %v718 = vmul.f32 %v361, %v716
        %v719 = vrot.slane %v710, 5
        %v721 = vmul.f32 %v361, %v719
        %v722 = vmul.f32 %v712, 10.0
        %v723 = vadd.f32 %v360, %v722
        %v724 = vmul.f32 %v715, 10.0
        %v725 = vadd.f32 %v360, %v724
        %v726 = vmul.f32 %v718, 10.0
        %v727 = vadd.f32 %v360, %v726
        %v728 = vmul.f32 %v721, 10.0
        %v729 = vadd.f32 %v360, %v728
        %v730 = vmul.f32 %v723, %v362
        %v731 = vmul.f32 %v725, %v364
        %v733 = vrot.slane %v731, 5
        %v734 = vrot.slane %v733, 4
        %v736 = vadd.f32 %v730, %v734
        %v737 = vmul.f32 %v727, %v371
        %v739 = vrot.slane %v737, 6
        %v740 = vrot.slane %v739, 4
        %v742 = vadd.f32 %v736, %v740
        %v743 = vmul.f32 %v729, %v378
        %v745 = vrot.slane %v743, 7
        %v746 = vrot.slane %v745, 4
        %v748 = vadd.f32 %v742, %v746
        %v749 = vadd.f32 %v748, %v385
        %v750 = vmul.f32 %v723, %v387
        %v751 = vmul.f32 %v725, %v389
        %v753 = vrot.slane %v751, 5
        %v754 = vrot.slane %v753, 4
        %v756 = vadd.f32 %v750, %v754
        %v757 = vmul.f32 %v727, %v396
        %v759 = vrot.slane %v757, 6
        %v760 = vrot.slane %v759, 4
        %v762 = vadd.f32 %v756, %v760
        %v763 = vmul.f32 %v729, %v403
        %v765 = vrot.slane %v763, 7
        %v766 = vrot.slane %v765, 4
        %v768 = vadd.f32 %v762, %v766
        %v769 = vadd.f32 %v768, %v410
        %v770 = vmul.f32 %v723, %v412
        %v771 = vmul.f32 %v725, %v414
        %v773 = vrot.slane %v771, 5
        %v774 = vrot.slane %v773, 4
        %v776 = vadd.f32 %v770, %v774
        %v777 = vmul.f32 %v727, %v421
        %v779 = vrot.slane %v777, 6
        %v780 = vrot.slane %v779, 4
        %v782 = vadd.f32 %v776, %v780
        %v783 = vmul.f32 %v729, %v428
        %v785 = vrot.slane %v783, 7
        %v786 = vrot.slane %v785, 4
        %v788 = vadd.f32 %v782, %v786
        %v789 = vadd.f32 %v788, %v435
        %v790 = vmul.f32 %v723, %v437
        %v791 = vmul.f32 %v725, %v439
        %v793 = vrot.slane %v791, 5
        %v794 = vrot.slane %v793, 4
        %v796 = vadd.f32 %v790, %v794
        %v797 = vmul.f32 %v727, %v446
        %v799 = vrot.slane %v797, 6
        %v800 = vrot.slane %v799, 4
        %v802 = vadd.f32 %v796, %v800
        %v803 = vmul.f32 %v729, %v453
        %v805 = vrot.slane %v803, 7
        %v806 = vrot.slane %v805, 4
        %v808 = vadd.f32 %v802, %v806
        %v809 = vadd.f32 %v808, %v460
        %v810 = vmul.f32 %v723, %v462
        %v811 = vmul.f32 %v725, %v464
        %v813 = vrot.slane %v811, 5
        %v814 = vrot.slane %v813, 4
        %v816 = vadd.f32 %v810, %v814
        %v817 = vmul.f32 %v727, %v471
        %v819 = vrot.slane %v817, 6
        %v820 = vrot.slane %v819, 4
        %v822 = vadd.f32 %v816, %v820
        %v823 = vmul.f32 %v729, %v478
        %v825 = vrot.slane %v823, 7
        %v826 = vrot.slane %v825, 4
        %v828 = vadd.f32 %v822, %v826
        %v829 = vadd.f32 %v828, %v485
        %v830 = vmul.f32 %v723, %v487
        %v831 = vmul.f32 %v725, %v489
        %v833 = vrot.slane %v831, 5
        %v834 = vrot.slane %v833, 4
        %v836 = vadd.f32 %v830, %v834
        %v837 = vmul.f32 %v727, %v496
        %v839 = vrot.slane %v837, 6
        %v840 = vrot.slane %v839, 4
        %v842 = vadd.f32 %v836, %v840
        %v843 = vmul.f32 %v729, %v503
        %v845 = vrot.slane %v843, 7
        %v846 = vrot.slane %v845, 4
        %v848 = vadd.f32 %v842, %v846
        %v849 = vadd.f32 %v848, %v510
        %v850 = vmul.f32 %v723, %v512
        %v851 = vmul.f32 %v725, %v514
        %v853 = vrot.slane %v851, 5
        %v854 = vrot.slane %v853, 4
        %v856 = vadd.f32 %v850, %v854
        %v857 = vmul.f32 %v727, %v521
        %v859 = vrot.slane %v857, 6
        %v860 = vrot.slane %v859, 4
        %v862 = vadd.f32 %v856, %v860
        %v863 = vmul.f32 %v729, %v528
        %v865 = vrot.slane %v863, 7
        %v866 = vrot.slane %v865, 4
        %v868 = vadd.f32 %v862, %v866
        %v869 = vadd.f32 %v868, %v535
        %v870 = vmul.f32 %v723, %v537
        %v871 = vmul.f32 %v725, %v539
        %v873 = vrot.slane %v871, 5
        %v874 = vrot.slane %v873, 4
        %v876 = vadd.f32 %v870, %v874
        %v877 = vmul.f32 %v727, %v546
        %v879 = vrot.slane %v877, 6
        %v880 = vrot.slane %v879, 4
        %v882 = vadd.f32 %v876, %v880
        %v883 = vmul.f32 %v729, %v553
        %v885 = vrot.slane %v883, 7
        %v886 = vrot.slane %v885, 4
        %v888 = vadd.f32 %v882, %v886
        %v889 = vadd.f32 %v888, %v560
        %v890 = vmax.f32 %v749, %v769
        %v891 = vmax.f32 %v890, %v789
        %v892 = vmax.f32 %v891, %v809
        %v893 = vmax.f32 %v892, %v829
        %v894 = vmax.f32 %v893, %v849
        %v895 = vmax.f32 %v894, %v869
        %v896 = vmax.f32 %v895, %v889
        %v897 = vsub.f32 %v749, %v896
        %v898 = vsub.f32 %v769, %v896
        %v899 = vsub.f32 %v789, %v896
        %v900 = vsub.f32 %v809, %v896
        %v901 = vsub.f32 %v829, %v896
        %v902 = vsub.f32 %v849, %v896
        %v903 = vsub.f32 %v869, %v896
        %v904 = vsub.f32 %v889, %v896
        %v905 = vmul.f32 %v897, 1.442695
        %v906 = vpow.pop %v905
        %v907 = vmul.f32 %v898, 1.442695
        %v908 = vpow.pop %v907
        %v909 = vmul.f32 %v899, 1.442695
        %v910 = vpow.pop %v909
        %v911 = vmul.f32 %v900, 1.442695
        %v912 = vpow.pop %v911
        %v913 = vmul.f32 %v901, 1.442695
        %v914 = vpow.pop %v913
        %v915 = vmul.f32 %v902, 1.442695
        %v916 = vpow.pop %v915
        %v917 = vmul.f32 %v903, 1.442695
        %v918 = vpow.pop %v917
        %v919 = vmul.f32 %v904, 1.442695
        %v920 = vpow.pop %v919
        %v921 = vadd.f32 %v906, %v908
        %v922 = vadd.f32 %v921, %v910
        %v923 = vadd.f32 %v922, %v912
        %v924 = vadd.f32 %v923, %v914
        %v925 = vadd.f32 %v924, %v916
        %v926 = vadd.f32 %v925, %v918
        %v927 = vadd.f32 %v926, %v920
        %v928 = vrcp.pop %v927
        %v929 = vmul.f32 %v906, %v928
        %v930 = vmul.f32 %v908, %v928
        %v931 = vmul.f32 %v910, %v928
        %v932 = vmul.f32 %v912, %v928
        %v933 = vmul.f32 %v914, %v928
        %v934 = vmul.f32 %v916, %v928
        %v935 = vmul.f32 %v918, %v928
        %v936 = vmul.f32 %v920, %v928
        %v937 = vadd.f32 %v929, 1e-16
        %v938 = vrcp.pop %v937
        %v939 = vmul.f32 %v604, %v938
        %v940 = vsub.f32 0.0, %v939
        %v941 = vmul.f32 %v940, 0.001953125
        %v942 = vadd.f32 %v930, 1e-16
        %v943 = vrcp.pop %v942
        %v944 = vmul.f32 %v605, %v943
        %v945 = vsub.f32 0.0, %v944
        %v946 = vmul.f32 %v945, 0.001953125
        %v947 = vadd.f32 %v931, 1e-16
        %v948 = vrcp.pop %v947
        %v949 = vmul.f32 %v606, %v948
        %v950 = vsub.f32 0.0, %v949
        %v951 = vmul.f32 %v950, 0.001953125
        %v952 = vadd.f32 %v932, 1e-16
        %v953 = vrcp.pop %v952
        %v954 = vmul.f32 %v607, %v953
        %v955 = vsub.f32 0.0, %v954
        %v956 = vmul.f32 %v955, 0.001953125
        %v957 = vadd.f32 %v933, 1e-16
        %v958 = vrcp.pop %v957
        %v959 = vmul.f32 %v608, %v958
        %v960 = vsub.f32 0.0, %v959
        %v961 = vmul.f32 %v960, 0.001953125
        %v962 = vadd.f32 %v934, 1e-16
        %v963 = vrcp.pop %v962
        %v964 = vmul.f32 %v609, %v963
        %v965 = vsub.f32 0.0, %v964
        %v966 = vmul.f32 %v965, 0.001953125
        %v967 = vadd.f32 %v935, 1e-16
        %v968 = vrcp.pop %v967
        %v969 = vmul.f32 %v610, %v968
        %v970 = vsub.f32 0.0, %v969
        %v971 = vmul.f32 %v970, 0.001953125
        %v972 = vadd.f32 %v936, 1e-16
        %v973 = vrcp.pop %v972
        %v974 = vmul.f32 %v611, %v973
        %v975 = vsub.f32 0.0, %v974
        %v976 = vmul.f32 %v975, 0.001953125
        %v977 = vmul.f32 %v941, %v929
        %v978 = vmul.f32 %v946, %v930
        %v979 = vadd.f32 %v977, %v978
        %v980 = vmul.f32 %v951, %v931
        %v981 = vadd.f32 %v979, %v980
        %v982 = vmul.f32 %v956, %v932
        %v983 = vadd.f32 %v981, %v982
        %v984 = vmul.f32 %v961, %v933
        %v985 = vadd.f32 %v983, %v984
        %v986 = vmul.f32 %v966, %v934
        %v987 = vadd.f32 %v985, %v986
        %v988 = vmul.f32 %v971, %v935
        %v989 = vadd.f32 %v987, %v988
        %v990 = vmul.f32 %v976, %v936
        %v991 = vadd.f32 %v989, %v990
        %v992 = vsub.f32 %v941, %v991
        %v993 = vmul.f32 %v929, %v992
        %v994 = vsub.f32 %v946, %v991
        %v995 = vmul.f32 %v930, %v994
        %v996 = vsub.f32 %v951, %v991
        %v997 = vmul.f32 %v931, %v996
        %v998 = vsub.f32 %v956, %v991
        %v999 = vmul.f32 %v932, %v998
        %v1000 = vsub.f32 %v961, %v991
        %v1001 = vmul.f32 %v933, %v1000
        %v1002 = vsub.f32 %v966, %v991
        %v1003 = vmul.f32 %v934, %v1002
        %v1004 = vsub.f32 %v971, %v991
        %v1005 = vmul.f32 %v935, %v1004
        %v1006 = vsub.f32 %v976, %v991
        %v1007 = vmul.f32 %v936, %v1006
        %v1008 = vmul.f32 %v993, %v362
        %v1009 = vmul.f32 %v995, %v387
        %v1010 = vadd.f32 %v1008, %v1009
        %v1011 = vmul.f32 %v997, %v412
        %v1012 = vadd.f32 %v1010, %v1011
        %v1013 = vmul.f32 %v999, %v437
        %v1014 = vadd.f32 %v1012, %v1013
        %v1015 = vmul.f32 %v1001, %v462
        %v1016 = vadd.f32 %v1014, %v1015
        %v1017 = vmul.f32 %v1003, %v487
        %v1018 = vadd.f32 %v1016, %v1017
        %v1019 = vmul.f32 %v1005, %v512
        %v1020 = vadd.f32 %v1018, %v1019
        %v1021 = vmul.f32 %v1007, %v537
        %v1022 = vadd.f32 %v1020, %v1021
        %v1023 = vmul.f32 %v1022, 10.0
        %v1024 = vmul.f32 %v993, %v364
        %v1025 = vmul.f32 %v995, %v389
        %v1026 = vadd.f32 %v1024, %v1025
        %v1027 = vmul.f32 %v997, %v414
        %v1028 = vadd.f32 %v1026, %v1027
        %v1029 = vmul.f32 %v999, %v439
        %v1030 = vadd.f32 %v1028, %v1029
        %v1031 = vmul.f32 %v1001, %v464
        %v1032 = vadd.f32 %v1030, %v1031
        %v1033 = vmul.f32 %v1003, %v489
        %v1034 = vadd.f32 %v1032, %v1033
        %v1035 = vmul.f32 %v1005, %v514
        %v1036 = vadd.f32 %v1034, %v1035
        %v1037 = vmul.f32 %v1007, %v539
        %v1038 = vadd.f32 %v1036, %v1037
        %v1039 = vmul.f32 %v1038, 10.0
        %v1040 = vmul.f32 %v993, %v371
        %v1041 = vmul.f32 %v995, %v396
        %v1042 = vadd.f32 %v1040, %v1041
        %v1043 = vmul.f32 %v997, %v421
        %v1044 = vadd.f32 %v1042, %v1043
        %v1045 = vmul.f32 %v999, %v446
        %v1046 = vadd.f32 %v1044, %v1045
        %v1047 = vmul.f32 %v1001, %v471
        %v1048 = vadd.f32 %v1046, %v1047
        %v1049 = vmul.f32 %v1003, %v496
        %v1050 = vadd.f32 %v1048, %v1049
        %v1051 = vmul.f32 %v1005, %v521
        %v1052 = vadd.f32 %v1050, %v1051
        %v1053 = vmul.f32 %v1007, %v546
        %v1054 = vadd.f32 %v1052, %v1053
        %v1055 = vmul.f32 %v1054, 10.0
        %v1056 = vmul.f32 %v993, %v378
        %v1057 = vmul.f32 %v995, %v403
        %v1058 = vadd.f32 %v1056, %v1057
        %v1059 = vmul.f32 %v997, %v428
        %v1060 = vadd.f32 %v1058, %v1059
        %v1061 = vmul.f32 %v999, %v453
        %v1062 = vadd.f32 %v1060, %v1061
        %v1063 = vmul.f32 %v1001, %v478
        %v1064 = vadd.f32 %v1062, %v1063
        %v1065 = vmul.f32 %v1003, %v503
        %v1066 = vadd.f32 %v1064, %v1065
        %v1067 = vmul.f32 %v1005, %v528
        %v1068 = vadd.f32 %v1066, %v1067
        %v1069 = vmul.f32 %v1007, %v553
        %v1070 = vadd.f32 %v1068, %v1069
        %v1071 = vmul.f32 %v1070, 10.0
        %v1072 = vmul.f32 %v1023, %v1023
        %v1074 = vlaneseq
        %v1075 = vshrl.u32 %v1074, 7
        %v1076 = vsub.s32 0, %v1075
        %v1077 = vrot.slane %v1072, %v1076
        %v1078 = vlaneseq
        %v1079 = vshrl.u32 %v1078, 7
        %v1080 = vsub.s32 4, %v1079
        %v1081 = vrot.slane %v1072, %v1080
        %v1084 = vsel %vm632, %v1077, 0.0
        %v1085 = vsel %vm632, %v1081, 0.0
        %v1086 = vadd.f32 %v1084, %v1085
        %1087 = vadd.xlane.f32.xlu0 %v1086
        %v1088 = vpop.xlane.xlu0 %1087
        %v1089 = vmul.f32 %v1039, %v1039
        %v1091 = vlaneseq
        %v1092 = vshrl.u32 %v1091, 7
        %v1093 = vsub.s32 0, %v1092
        %v1094 = vrot.slane %v1089, %v1093
        %v1095 = vlaneseq
        %v1096 = vshrl.u32 %v1095, 7
        %v1097 = vsub.s32 4, %v1096
        %v1098 = vrot.slane %v1089, %v1097
        %v1101 = vsel %vm632, %v1094, 0.0
        %v1102 = vsel %vm632, %v1098, 0.0
        %v1103 = vadd.f32 %v1101, %v1102
        %1104 = vadd.xlane.f32.xlu0 %v1103
        %v1105 = vpop.xlane.xlu0 %1104
        %v1106 = vadd.f32 %v1088, %v1105
        %v1107 = vmul.f32 %v1055, %v1055
        %v1109 = vlaneseq
        %v1110 = vshrl.u32 %v1109, 7
        %v1111 = vsub.s32 0, %v1110
        %v1112 = vrot.slane %v1107, %v1111
        %v1113 = vlaneseq
        %v1114 = vshrl.u32 %v1113, 7
        %v1115 = vsub.s32 4, %v1114
        %v1116 = vrot.slane %v1107, %v1115
        %v1119 = vsel %vm632, %v1112, 0.0
        %v1120 = vsel %vm632, %v1116, 0.0
        %v1121 = vadd.f32 %v1119, %v1120
        %1122 = vadd.xlane.f32.xlu0 %v1121
        %v1123 = vpop.xlane.xlu0 %1122
        %v1124 = vadd.f32 %v1106, %v1123
        %v1125 = vmul.f32 %v1071, %v1071
        %v1127 = vlaneseq
        %v1128 = vshrl.u32 %v1127, 7
        %v1129 = vsub.s32 0, %v1128
        %v1130 = vrot.slane %v1125, %v1129
        %v1131 = vlaneseq
        %v1132 = vshrl.u32 %v1131, 7
        %v1133 = vsub.s32 4, %v1132
        %v1134 = vrot.slane %v1125, %v1133
        %v1137 = vsel %vm632, %v1130, 0.0
        %v1138 = vsel %vm632, %v1134, 0.0
        %v1139 = vadd.f32 %v1137, %v1138
        %1140 = vadd.xlane.f32.xlu0 %v1139
        %v1141 = vpop.xlane.xlu0 %1140
        %v1142 = vadd.f32 %v1124, %v1141
        %v1143 = vadd.f32 %v1142, 1e-12
        %v1144 = vrsqrt.pop %v1143
        %v1147 = vunpack.c.l.s4 839922192
        %v1148 = vunpack.c.0.s8 %v1147
        %v1149 = vlaneseq
        %v1150 = vshrl.u32 %v1149, 7
        %v1151 = vsub.s32 %v1148, %v1150
        %v1152 = vrot.slane %v1144, %v1151
        %v1154 = vmul.f32 %v1023, %v1152
        %v1155 = vmul.f32 %v1039, %v1152
        %v1156 = vmul.f32 %v1055, %v1152
        %v1157 = vmul.f32 %v1071, %v1152
        %v1158 = vmul.f32 %v1154, 0.25
        %v1159 = vmul.f32 %v1155, 0.25
        %v1160 = vmul.f32 %v1156, 0.25
        %v1161 = vmul.f32 %v1157, 0.25
        %v1162 = vadd.f32 %v360, %v1158
        %v1164 = vrot.slane %v1159, 7
        %v1166 = vadd.f32 %v360, %v1164
        %v1168 = vrot.slane %v1160, 6
        %v1170 = vadd.f32 %v360, %v1168
        %v1172 = vrot.slane %v1161, 5
        %v1174 = vadd.f32 %v360, %v1172
        %v1175 = vmul.f32 %v1162, %v362
        %v1176 = vmul.f32 %v1166, %v364
        %v1178 = vrot.slane %v1176, 5
        %v1179 = vrot.slane %v1178, 4
        %v1181 = vadd.f32 %v1175, %v1179
        %v1182 = vmul.f32 %v1170, %v371
        %v1184 = vrot.slane %v1182, 6
        %v1185 = vrot.slane %v1184, 4
        %v1187 = vadd.f32 %v1181, %v1185
        %v1188 = vmul.f32 %v1174, %v378
        %v1190 = vrot.slane %v1188, 7
        %v1191 = vrot.slane %v1190, 4
        %v1193 = vadd.f32 %v1187, %v1191
        %v1194 = vadd.f32 %v1193, %v385
        %v1195 = vmul.f32 %v1162, %v387
        %v1196 = vmul.f32 %v1166, %v389
        %v1198 = vrot.slane %v1196, 5
        %v1199 = vrot.slane %v1198, 4
        %v1201 = vadd.f32 %v1195, %v1199
        %v1202 = vmul.f32 %v1170, %v396
        %v1204 = vrot.slane %v1202, 6
        %v1205 = vrot.slane %v1204, 4
        %v1207 = vadd.f32 %v1201, %v1205
        %v1208 = vmul.f32 %v1174, %v403
        %v1210 = vrot.slane %v1208, 7
        %v1211 = vrot.slane %v1210, 4
        %v1213 = vadd.f32 %v1207, %v1211
        %v1214 = vadd.f32 %v1213, %v410
        %v1215 = vmul.f32 %v1162, %v412
        %v1216 = vmul.f32 %v1166, %v414
        %v1218 = vrot.slane %v1216, 5
        %v1219 = vrot.slane %v1218, 4
        %v1221 = vadd.f32 %v1215, %v1219
        %v1222 = vmul.f32 %v1170, %v421
        %v1224 = vrot.slane %v1222, 6
        %v1225 = vrot.slane %v1224, 4
        %v1227 = vadd.f32 %v1221, %v1225
        %v1228 = vmul.f32 %v1174, %v428
        %v1230 = vrot.slane %v1228, 7
        %v1231 = vrot.slane %v1230, 4
        %v1233 = vadd.f32 %v1227, %v1231
        %v1234 = vadd.f32 %v1233, %v435
        %v1235 = vmul.f32 %v1162, %v437
        %v1236 = vmul.f32 %v1166, %v439
        %v1238 = vrot.slane %v1236, 5
        %v1239 = vrot.slane %v1238, 4
        %v1241 = vadd.f32 %v1235, %v1239
        %v1242 = vmul.f32 %v1170, %v446
        %v1244 = vrot.slane %v1242, 6
        %v1245 = vrot.slane %v1244, 4
        %v1247 = vadd.f32 %v1241, %v1245
        %v1248 = vmul.f32 %v1174, %v453
        %v1250 = vrot.slane %v1248, 7
        %v1251 = vrot.slane %v1250, 4
        %v1253 = vadd.f32 %v1247, %v1251
        %v1254 = vadd.f32 %v1253, %v460
        %v1255 = vmul.f32 %v1162, %v462
        %v1256 = vmul.f32 %v1166, %v464
        %v1258 = vrot.slane %v1256, 5
        %v1259 = vrot.slane %v1258, 4
        %v1261 = vadd.f32 %v1255, %v1259
        %v1262 = vmul.f32 %v1170, %v471
        %v1264 = vrot.slane %v1262, 6
        %v1265 = vrot.slane %v1264, 4
        %v1267 = vadd.f32 %v1261, %v1265
        %v1268 = vmul.f32 %v1174, %v478
        %v1270 = vrot.slane %v1268, 7
        %v1271 = vrot.slane %v1270, 4
        %v1273 = vadd.f32 %v1267, %v1271
        %v1274 = vadd.f32 %v1273, %v485
        %v1275 = vmul.f32 %v1162, %v487
        %v1276 = vmul.f32 %v1166, %v489
        %v1278 = vrot.slane %v1276, 5
        %v1279 = vrot.slane %v1278, 4
        %v1281 = vadd.f32 %v1275, %v1279
        %v1282 = vmul.f32 %v1170, %v496
        %v1284 = vrot.slane %v1282, 6
        %v1285 = vrot.slane %v1284, 4
        %v1287 = vadd.f32 %v1281, %v1285
        %v1288 = vmul.f32 %v1174, %v503
        %v1290 = vrot.slane %v1288, 7
        %v1291 = vrot.slane %v1290, 4
        %v1293 = vadd.f32 %v1287, %v1291
        %v1294 = vadd.f32 %v1293, %v510
        %v1295 = vmul.f32 %v1162, %v512
        %v1296 = vmul.f32 %v1166, %v514
        %v1298 = vrot.slane %v1296, 5
        %v1299 = vrot.slane %v1298, 4
        %v1301 = vadd.f32 %v1295, %v1299
        %v1302 = vmul.f32 %v1170, %v521
        %v1304 = vrot.slane %v1302, 6
        %v1305 = vrot.slane %v1304, 4
        %v1307 = vadd.f32 %v1301, %v1305
        %v1308 = vmul.f32 %v1174, %v528
        %v1310 = vrot.slane %v1308, 7
        %v1311 = vrot.slane %v1310, 4
        %v1313 = vadd.f32 %v1307, %v1311
        %v1314 = vadd.f32 %v1313, %v535
        %v1315 = vmul.f32 %v1162, %v537
        %v1316 = vmul.f32 %v1166, %v539
        %v1318 = vrot.slane %v1316, 5
        %v1319 = vrot.slane %v1318, 4
        %v1321 = vadd.f32 %v1315, %v1319
        %v1322 = vmul.f32 %v1170, %v546
        %v1324 = vrot.slane %v1322, 6
        %v1325 = vrot.slane %v1324, 4
        %v1327 = vadd.f32 %v1321, %v1325
        %v1328 = vmul.f32 %v1174, %v553
        %v1330 = vrot.slane %v1328, 7
        %v1331 = vrot.slane %v1330, 4
        %v1333 = vadd.f32 %v1327, %v1331
        %v1334 = vadd.f32 %v1333, %v560
        %v1335 = vmax.f32 %v1194, %v1214
        %v1336 = vmax.f32 %v1335, %v1234
        %v1337 = vmax.f32 %v1336, %v1254
        %v1338 = vmax.f32 %v1337, %v1274
        %v1339 = vmax.f32 %v1338, %v1294
        %v1340 = vmax.f32 %v1339, %v1314
        %v1341 = vmax.f32 %v1340, %v1334
        %v1342 = vsub.f32 %v1194, %v1341
        %v1343 = vsub.f32 %v1214, %v1341
        %v1344 = vsub.f32 %v1234, %v1341
        %v1345 = vsub.f32 %v1254, %v1341
        %v1346 = vsub.f32 %v1274, %v1341
        %v1347 = vsub.f32 %v1294, %v1341
        %v1348 = vsub.f32 %v1314, %v1341
        %v1349 = vsub.f32 %v1334, %v1341
        %v1350 = vmul.f32 %v1342, 1.442695
        %v1351 = vpow.pop %v1350
        %v1352 = vmul.f32 %v1343, 1.442695
        %v1353 = vpow.pop %v1352
        %v1354 = vmul.f32 %v1344, 1.442695
        %v1355 = vpow.pop %v1354
        %v1356 = vmul.f32 %v1345, 1.442695
        %v1357 = vpow.pop %v1356
        %v1358 = vmul.f32 %v1346, 1.442695
        %v1359 = vpow.pop %v1358
        %v1360 = vmul.f32 %v1347, 1.442695
        %v1361 = vpow.pop %v1360
        %v1362 = vmul.f32 %v1348, 1.442695
        %v1363 = vpow.pop %v1362
        %v1364 = vmul.f32 %v1349, 1.442695
        %v1365 = vpow.pop %v1364
        %v1366 = vadd.f32 %v1351, %v1353
        %v1367 = vadd.f32 %v1366, %v1355
        %v1368 = vadd.f32 %v1367, %v1357
        %v1369 = vadd.f32 %v1368, %v1359
        %v1370 = vadd.f32 %v1369, %v1361
        %v1371 = vadd.f32 %v1370, %v1363
        %v1372 = vadd.f32 %v1371, %v1365
        %v1373 = vlog2.pop %v1372
        %v1374 = vmul.f32 %v1373, 0.6931472
        %v1375 = vsub.f32 %v1342, %v1374
        %v1376 = vsub.f32 %v612, %v1375
        %v1377 = vmul.f32 %v604, %v1376
        %v1378 = vsub.f32 %v1343, %v1374
        %v1379 = vsub.f32 %v613, %v1378
        %v1380 = vmul.f32 %v605, %v1379
        %v1381 = vadd.f32 %v1377, %v1380
        %v1382 = vsub.f32 %v1344, %v1374
        %v1383 = vsub.f32 %v614, %v1382
        %v1384 = vmul.f32 %v606, %v1383
        %v1385 = vadd.f32 %v1381, %v1384
        %v1386 = vsub.f32 %v1345, %v1374
        %v1387 = vsub.f32 %v615, %v1386
        %v1388 = vmul.f32 %v607, %v1387
        %v1389 = vadd.f32 %v1385, %v1388
        %v1390 = vsub.f32 %v1346, %v1374
        %v1391 = vsub.f32 %v616, %v1390
        %v1392 = vmul.f32 %v608, %v1391
        %v1393 = vadd.f32 %v1389, %v1392
        %v1394 = vsub.f32 %v1347, %v1374
        %v1395 = vsub.f32 %v617, %v1394
        %v1396 = vmul.f32 %v609, %v1395
        %v1397 = vadd.f32 %v1393, %v1396
        %v1398 = vsub.f32 %v1348, %v1374
        %v1399 = vsub.f32 %v618, %v1398
        %v1400 = vmul.f32 %v610, %v1399
        %v1401 = vadd.f32 %v1397, %v1400
        %v1402 = vsub.f32 %v1349, %v1374
        %v1403 = vsub.f32 %v619, %v1402
        %v1404 = vmul.f32 %v611, %v1403
        %v1405 = vadd.f32 %v1401, %v1404
        %v1407 = vlaneseq
        %v1408 = vshrl.u32 %v1407, 7
        %v1409 = vsub.s32 0, %v1408
        %v1410 = vrot.slane %v1405, %v1409
        %v1411 = vlaneseq
        %v1412 = vshrl.u32 %v1411, 7
        %v1413 = vsub.s32 4, %v1412
        %v1414 = vrot.slane %v1405, %v1413
        %v1417 = vsel %vm632, %v1410, 0.0
        %v1418 = vsel %vm632, %v1414, 0.0
        %v1419 = vadd.f32 %v1417, %v1418
        %1420 = vadd.xlane.f32.xlu0 %v1419
        %v1421 = vpop.xlane.xlu0 %1420
        %v1422 = vrot.slane %v1421, 4
        %v1423 = vadd.f32 %v1421, %v1422
        %v1424 = vrot.slane %v1423, 2
        %v1425 = vadd.f32 %v1423, %v1424
        %v1426 = vrot.slane %v1425, 1
        %v1427 = vadd.f32 %v1425, %v1426
        %s1428 = vtos %v1427
        %v1429 = vstv %s1428
        %1430 = vst [vmem:[%s309] sm:$0x1] %v1429
        %v1433 = vunpack.c.l.s4 1966171168
        %v1434 = vunpack.c.0.s8 %v1433
        %v1435 = vlaneseq
        %v1436 = vshrl.u32 %v1435, 7
        %v1437 = vsub.s32 %v1434, %v1436
        %v1438 = vrot.slane %v1162, %v1437
        %v1440 = vunpack.c.l.s4 1966171168
        %v1441 = vunpack.c.0.s8 %v1440
        %v1442 = vlaneseq
        %v1443 = vshrl.u32 %v1442, 7
        %v1444 = vsub.s32 %v1441, %v1443
        %v1445 = vrot.slane %v1438, %v1444
        %v1447 = vlaneseq
        %vm1448 = vcmp.ge.s32.totalorder %v1447, 0
        %vm1449 = vcmp.lt.s32.totalorder %v1447, 256
        %vm1450 = vmand %vm1448, %vm1449
        %1451 = vst.msk [vmem:[%s314] ss:$4 sm:$0x3] %vm1450, %v1445
        %v1454 = vunpack.c.l.s4 1966171168
        %v1455 = vunpack.c.0.s8 %v1454
        %v1456 = vlaneseq
        %v1457 = vshrl.u32 %v1456, 7
        %v1458 = vsub.s32 %v1455, %v1457
        %v1459 = vrot.slane %v1158, %v1458
        %v1461 = vunpack.c.l.s4 1966171168
        %v1462 = vunpack.c.0.s8 %v1461
        %v1463 = vlaneseq
        %v1464 = vshrl.u32 %v1463, 7
        %v1465 = vsub.s32 %v1462, %v1464
        %v1466 = vrot.slane %v1459, %v1465
        %1468 = vst.msk [vmem:[%s319] ss:$4 sm:$0x3] %vm1450, %v1466
        %v1471 = vunpack.c.l.s4 1966171168
        %v1472 = vunpack.c.0.s8 %v1471
        %v1473 = vlaneseq
        %v1474 = vshrl.u32 %v1473, 7
        %v1475 = vsub.s32 %v1472, %v1474
        %v1476 = vrot.slane %v1166, %v1475
        %v1477 = vcombine.high %v1476, %v1476
        %v1479 = vunpack.c.l.s4 1966171168
        %v1480 = vunpack.c.0.s8 %v1479
        %v1481 = vlaneseq
        %v1482 = vshrl.u32 %v1481, 7
        %v1483 = vsub.s32 %v1480, %v1482
        %v1484 = vrot.slane %v1477, %v1483
        %s1486 = scalar_lea.vmem %s314, 1
        %1487 = vst.msk [vmem:[%s1486] ss:$4 sm:$0x3] %vm1450, %v1484
        %v1489 = vunpack.c.l.s4 1966171168
        %v1490 = vunpack.c.0.s8 %v1489
        %v1491 = vlaneseq
        %v1492 = vshrl.u32 %v1491, 7
        %v1493 = vsub.s32 %v1490, %v1492
        %v1494 = vrot.slane %v1159, %v1493
        %v1496 = vunpack.c.l.s4 1966171168
        %v1497 = vunpack.c.0.s8 %v1496
        %v1498 = vlaneseq
        %v1499 = vshrl.u32 %v1498, 7
        %v1500 = vsub.s32 %v1497, %v1499
        %v1501 = vrot.slane %v1494, %v1500
        %s1503 = scalar_lea.vmem %s319, 1
        %1504 = vst.msk [vmem:[%s1503] ss:$4 sm:$0x3] %vm1450, %v1501
        %v1507 = vunpack.c.l.s4 1966171168
        %v1508 = vunpack.c.0.s8 %v1507
        %v1509 = vlaneseq
        %v1510 = vshrl.u32 %v1509, 7
        %v1511 = vsub.s32 %v1508, %v1510
        %v1512 = vrot.slane %v1170, %v1511
        %v1514 = vunpack.c.l.s4 1966171168
        %v1515 = vunpack.c.0.s8 %v1514
        %v1516 = vlaneseq
        %v1517 = vshrl.u32 %v1516, 7
        %v1518 = vsub.s32 %v1515, %v1517
        %v1519 = vrot.slane %v1512, %v1518
        %v1520 = vcombine.high %v1519, %v1519
        %s1522 = scalar_lea.vmem %s314, 2
        %1523 = vst.msk [vmem:[%s1522] ss:$4 sm:$0x3] %vm1450, %v1520
        %v1525 = vunpack.c.l.s4 1966171168
        %v1526 = vunpack.c.0.s8 %v1525
        %v1527 = vlaneseq
        %v1528 = vshrl.u32 %v1527, 7
        %v1529 = vsub.s32 %v1526, %v1528
        %v1530 = vrot.slane %v1160, %v1529
        %v1532 = vunpack.c.l.s4 1966171168
        %v1533 = vunpack.c.0.s8 %v1532
        %v1534 = vlaneseq
        %v1535 = vshrl.u32 %v1534, 7
        %v1536 = vsub.s32 %v1533, %v1535
        %v1537 = vrot.slane %v1530, %v1536
        %s1539 = scalar_lea.vmem %s319, 2
        %1540 = vst.msk [vmem:[%s1539] ss:$4 sm:$0x3] %vm1450, %v1537
        %v1543 = vunpack.c.l.s4 1966171168
        %v1544 = vunpack.c.0.s8 %v1543
        %v1545 = vlaneseq
        %v1546 = vshrl.u32 %v1545, 7
        %v1547 = vsub.s32 %v1544, %v1546
        %v1548 = vrot.slane %v1174, %v1547
        %v1549 = vcombine.high %v1548, %v1548
        %v1551 = vunpack.c.l.s4 1966171168
        %v1552 = vunpack.c.0.s8 %v1551
        %v1553 = vlaneseq
        %v1554 = vshrl.u32 %v1553, 7
        %v1555 = vsub.s32 %v1552, %v1554
        %v1556 = vrot.slane %v1549, %v1555
        %v1557 = vcombine.high %v1556, %v1556
        %s1559 = scalar_lea.vmem %s314, 3
        %1560 = vst.msk [vmem:[%s1559] ss:$4 sm:$0x3] %vm1450, %v1557
        %v1562 = vunpack.c.l.s4 1966171168
        %v1563 = vunpack.c.0.s8 %v1562
        %v1564 = vlaneseq
        %v1565 = vshrl.u32 %v1564, 7
        %v1566 = vsub.s32 %v1563, %v1565
        %v1567 = vrot.slane %v1161, %v1566
        %v1569 = vunpack.c.l.s4 1966171168
        %v1570 = vunpack.c.0.s8 %v1569
        %v1571 = vlaneseq
        %v1572 = vshrl.u32 %v1571, 7
        %v1573 = vsub.s32 %v1570, %v1572
        %v1574 = vrot.slane %v1567, %v1573
        %s1576 = scalar_lea.vmem %s319, 3
        %1577 = vst.msk [vmem:[%s1576] ss:$4 sm:$0x3] %vm1450, %v1574
        %p1578 = scmp.lt.s32.totalorder %s20, 1
        %s1579 = scalar_select %p1578, %s20, 1
        %s1580 = scalar_lea.vmem %s4, %s1579
        %p1581 = scmp.lt.s32.totalorder %s20, 1
        %s1582 = scalar_select %p1581, %s20, 1
        %s1583 = smul.addr %s1582, 2
        %s1584 = smul.addr %s1583, 4
        %s1585 = scalar_lea.vmem %s5, %s1584
        %p1586 = scmp.lt.s32.totalorder %s20, 1
        %s1587 = scalar_select %p1586, %s20, 1
        %s1588 = smul.addr %s1587, 2
        %s1589 = smul.addr %s1588, 4
        %s1590 = scalar_lea.vmem %s6, %s1589
        // Predicated region
        $region45: #{vat_loss.1} parent=35 // pred_check
          %p1591 = pneg %p132
        $region46: #{vat_loss.1} parent=35 // pred_check_branch
          %1593 = sbr.rel (%p1591) target = $region48
        $region47: #{vat_loss.1} parent=35 // pred_region
          _
        $region48: #{vat_loss.1} parent=35 // pred_fallthru
          _
        // Predicated region
        $region49: #{vat_loss.1} parent=35 // pred_check
          %p1594 = pneg %p158
        $region50: #{vat_loss.1} parent=35 // pred_check_branch
          %1596 = sbr.rel (%p1594) target = $region52
        $region51: #{vat_loss.1} parent=35 // pred_region
          _
        $region52: #{vat_loss.1} parent=35 // pred_fallthru
          _
        // Predicated region
        $region53: #{vat_loss.1} parent=35 // pred_check
          %p1597 = pneg %p184
        $region54: #{vat_loss.1} parent=35 // pred_check_branch
          %1599 = sbr.rel (%p1597) target = $region56
        $region55: #{vat_loss.1} parent=35 // pred_region
          _
        $region56: #{vat_loss.1} parent=35 // pred_fallthru
          _
      $region36: #{vat_loss.1} parent=5 // pred_fallthru
        _
      %p1600 = scmp.le.s32.totalorder 2, %s15
      // Predicated region
      $region57: #{vat_loss.1} parent=5 // pred_check
        %p1601 = pneg %p1600
      $region58: #{vat_loss.1} parent=5 // pred_check_branch
        %1603 = sbr.rel (%p1601) target = $region60
      $region59: #{vat_loss.1} parent=5 // pred_region
        %s1604 = ssub.s32 %s15, 2
        // Predicated region
        $region61: #{vat_loss.1} parent=59 // pred_check
          %p1605 = pneg %p138
        $region62: #{vat_loss.1} parent=59 // pred_check_branch
          %1607 = sbr.rel (%p1605) target = $region64
        $region63: #{vat_loss.1} parent=59 // pred_region
          %p1608 = scmp.lt.s32.totalorder %s21, 1
          %s1609 = scalar_select %p1608, %s21, 1
          %s1610 = scalar_lea.vmem %s4, %s1609
        $region64: #{vat_loss.1} parent=59 // pred_fallthru
          _
        // Predicated region
        $region65: #{vat_loss.1} parent=59 // pred_check
          %p1611 = pneg %p164
        $region66: #{vat_loss.1} parent=59 // pred_check_branch
          %1613 = sbr.rel (%p1611) target = $region68
        $region67: #{vat_loss.1} parent=59 // pred_region
          %p1614 = scmp.lt.s32.totalorder %s21, 1
          %s1615 = scalar_select %p1614, %s21, 1
          %s1616 = smul.addr %s1615, 2
          %s1617 = smul.addr %s1616, 4
          %s1618 = scalar_lea.vmem %s5, %s1617
        $region68: #{vat_loss.1} parent=59 // pred_fallthru
          _
        // Predicated region
        $region69: #{vat_loss.1} parent=59 // pred_check
          %p1619 = pneg %p190
        $region70: #{vat_loss.1} parent=59 // pred_check_branch
          %1621 = sbr.rel (%p1619) target = $region72
        $region71: #{vat_loss.1} parent=59 // pred_region
          %p1622 = scmp.lt.s32.totalorder %s21, 1
          %s1623 = scalar_select %p1622, %s21, 1
          %s1624 = smul.addr %s1623, 2
          %s1625 = smul.addr %s1624, 4
          %s1626 = scalar_lea.vmem %s6, %s1625
        $region72: #{vat_loss.1} parent=59 // pred_fallthru
          _
      $region60: #{vat_loss.1} parent=5 // pred_fallthru
        _
    $region6: #{vat_loss.1} parent=1 // loop_footer
      %s19 = sadd.s32 1, %s15
    $region7: #{vat_loss.1} parent=1 // loop_footer_branch
      %14 = sbr.rel target = $region3
    $region8: #{vat_loss.1} parent=1 // loop_exit
      _
    %1627 = vsyncpa [#allocation3], 1
    %s1628 = scalar_lea.sflag [#allocation3], 1
    %1629 = vsyncpa %s1628, 1
    %1630 = vsyncpa [#allocation5], 1

</llo_original>
